<compile_context>
chip_gen: v7x
topology: tpu7x:2x2x1
jax: 0.10.0
libtpu: 0.0.40
codegen_flags: <defaults>
</compile_context>

<pallas_src>
import jax
import jax.numpy as jnp
from jax.experimental import pallas as pl
from jax.experimental.pallas import tpu as pltpu


def _round_up(x: int, m: int) -> int:
    return ((x + m - 1) // m) * m


def _make_kernel(use_mask: bool):
    def kernel(*refs):
        if use_mask:
            (img_ref, radar_ref, wq_ref, bq_ref, wkv_ref, bkv_ref,
             mask_ref, o_ref) = refs
        else:
            (img_ref, radar_ref, wq_ref, bq_ref, wkv_ref, bkv_ref,
             o_ref) = refs
            mask_ref = None

        bt, nq, d = img_ref.shape          # d == D_pad (multiple of 128)
        _, nk, _ = radar_ref.shape         # nq, nk multiples of 8

        img = img_ref[...]                 # (bt, nq, d), native dtype (f32/bf16)
        radar = radar_ref[...]             # (bt, nk, d)
        tok_dtype = img.dtype

        # --- Projections: collapse batch into rows -> two big MXU matmuls.
        #     1/sqrt(D) is already folded into Wq / bq at prep time. ---
        q2d = jnp.dot(img.reshape(bt * nq, d), wq_ref[...],
                      preferred_element_type=jnp.float32) + bq_ref[...]
        kv2d = jnp.dot(radar.reshape(bt * nk, d), wkv_ref[...],
                       preferred_element_type=jnp.float32) + bkv_ref[...]

        # Cast back to the token dtype so the attention matmuls run on the MXU's
        # native (bf16) fast path; accumulation stays f32.
        q = q2d.reshape(bt, nq, d).astype(tok_dtype)
        k = kv2d[:, :d].reshape(bt, nk, d).astype(tok_dtype)  # tile-aligned slice
        v = kv2d[:, d:].reshape(bt, nk, d).astype(tok_dtype)

        # --- Scaled dot-product attention; contraction expressed directly
        #     (no materialized K^T). ---
        s = jnp.einsum("bqd,bkd->bqk", q, k,
                       preferred_element_type=jnp.float32)
        if use_mask:
            # Padded radar rows project to k = bk (non-zero bias): this -1e30
            # additive mask is what keeps them out of the softmax.
            s = s + mask_ref[...][None]
        s = s - jnp.max(s, axis=-1, keepdims=True)
        p = jnp.exp(s)

        denom = jnp.sum(p, axis=-1, keepdims=True)
        r = pl.reciprocal(denom, approx=True)   # EUP slot (otherwise idle)
        r = r * (2.0 - denom * r)               # one Newton step -> ~f32 accuracy

        # Normalize AFTER the PV matmul: (b,Nq,D) multiply instead of (b,Nq,Nk).
        fused = jnp.einsum("bqk,bkd->bqd", p.astype(tok_dtype), v,
                           preferred_element_type=jnp.float32)

        # Residual add; store is lane-dense (d is a multiple of 128).
        o_ref[...] = (img.astype(jnp.float32) + fused * r).astype(o_ref.dtype)

    return kernel


def prepare_cross_attention_params(params, embed_dim, *, weight_dtype=None):
    """One-time weight preparation (do NOT call per forward pass).

    params: dict with pre-transposed nn.Linear weights wq/wk/wv of shape
    (D_in, D_out) (i.e. torch_weight.T) and biases bq/bk/bv of shape (D,) or
    (1, D). Returns lane-padded, K|V-fused, scale-folded weights. Pass
    weight_dtype=jnp.bfloat16 on v6e/v7x to halve weight DMA / VMEM.
    """
    D = int(embed_dim)
    D_pad = _round_up(D, 128)
    inv_scale = 1.0 / (float(D) ** 0.5)

    def w2d(w):
        w = jnp.asarray(w)
        assert w.shape == (D, D)
        return w

    def b2d(b):
        return jnp.asarray(b).reshape(1, D)

    def pad_w(w):
        return jnp.pad(w, ((0, D_pad - D), (0, D_pad - D)))

    def pad_b(b):
        return jnp.pad(b, ((0, 0), (0, D_pad - D)))

    wq = pad_w(w2d(params["wq"]) * inv_scale)      # fold the attention scale
    bq = pad_b(b2d(params["bq"]) * inv_scale)
    wkv = jnp.concatenate([pad_w(w2d(params["wk"])),
                           pad_w(w2d(params["wv"]))], axis=1)
    bkv = jnp.concatenate([pad_b(b2d(params["bk"])),
                           pad_b(b2d(params["bv"]))], axis=1)

    if weight_dtype is not None:                   # matmul weights only; biases
        wq = wq.astype(weight_dtype)               # stay f32 (added post-acc).
        wkv = wkv.astype(weight_dtype)

    return {"wq": wq, "bq": bq, "wkv": wkv, "bkv": bkv,
            "embed_dim": D, "d_pad": D_pad}


def _derive_block_b(B, Nq_pad, Nk_pad, D_pad, tok_bytes, vmem_budget_bytes,
                    weight_bytes):
    # Per-batch-row footprint: double-buffered token blocks + output block,
    # plus the f32 in-kernel temporaries (q, k|v, scores, fused).
    io = (2 * (Nq_pad + Nk_pad) + 2 * Nq_pad) * D_pad * tok_bytes
    tmp = 4 * (Nq_pad * D_pad + Nk_pad * 2 * D_pad + Nq_pad * Nk_pad
               + Nq_pad * D_pad)
    per_b = io + tmp
    avail = max(vmem_budget_bytes - weight_bytes, per_b)
    return int(max(1, min(B, avail // per_b)))


def cross_attention_fusion(img_tokens, radar_tokens, prepared, *,
                           block_b=None,
                           vmem_budget_bytes=40 * 1024 * 1024,
                           vmem_limit_bytes=64 * 1024 * 1024,
                           min_grid_steps=1,
                           single_buffer_weights=True):
    """img_tokens: (B, Nq, D); radar_tokens: (B, Nk, D).

    `prepared` is the output of prepare_cross_attention_params (one-time init).
    On v7x pass min_grid_steps=2 so both TensorCores get a batch block.
    """
    B, Nq, D = img_tokens.shape
    Bk, Nk, Dk = radar_tokens.shape
    assert B == Bk and D == Dk == prepared["embed_dim"]

    D_pad = prepared["d_pad"]
    Nq_pad = _round_up(Nq, 8)
    Nk_pad = _round_up(Nk, 8)

    wq, bq, wkv, bkv = (prepared["wq"], prepared["bq"],
                        prepared["wkv"], prepared["bkv"])
    tok_bytes = jnp.dtype(img_tokens.dtype).itemsize
    weight_bytes = sum(int(x.size) * jnp.dtype(x.dtype).itemsize
                       for x in (wq, bq, wkv, bkv))

    # Batch tiling: largest block within the VMEM budget (the grid is a serial
    # loop on single-TC v5e/v6e, so bigger blocks win; min_grid_steps covers
    # dual-TC v7x sharding).
    if block_b is None:
        block_b = _derive_block_b(B, Nq_pad, Nk_pad, D_pad, tok_bytes,
                                  vmem_budget_bytes, weight_bytes)
    if min_grid_steps > 1:
        block_b = max(1, min(block_b, -(-B // min_grid_steps)))
    block_b = int(block_b)
    B_pad = _round_up(B, block_b)
    grid_b = B_pad // block_b

    # Token padding only when actually needed (aligned shapes are true no-ops).
    pad_img = (B_pad - B, Nq_pad - Nq, D_pad - D)
    pad_rad = (B_pad - B, Nk_pad - Nk, D_pad - D)
    img_p = img_tokens if not any(pad_img) else jnp.pad(
        img_tokens, tuple((0, p) for p in pad_img))
    radar_p = radar_tokens if not any(pad_rad) else jnp.pad(
        radar_tokens, tuple((0, p) for p in pad_rad))

    use_mask = Nk_pad > Nk   # only emit the mask when radar tokens are padded

    cost = pl.CostEstimate(
        flops=int(2 * B_pad * Nq_pad * D_pad * D_pad            # Q projection
                  + 2 * B_pad * Nk_pad * D_pad * 2 * D_pad      # K|V projection
                  + 4 * B_pad * Nq_pad * Nk_pad * D_pad),       # QK^T + PV
        transcendentals=int(B_pad * Nq_pad * (Nk_pad + 1)),     # exp + rcp
        bytes_accessed=int(
            (2 * B_pad * Nq_pad * D_pad + B_pad * Nk_pad * D_pad) * tok_bytes
            + weight_bytes),
    )

    def build_and_run(buffer_weights_once):
        def const_spec(shape):
            kwargs = {}
            if buffer_weights_once:
                # Grid-invariant blocks: a single VMEM buffer is enough.
                kwargs["pipeline_mode"] = pl.Buffered(1)
            return pl.BlockSpec(shape, lambda b: (0,) * len(shape), **kwargs)

        in_specs = [
            pl.BlockSpec((block_b, Nq_pad, D_pad), lambda b: (b, 0, 0)),
            pl.BlockSpec((block_b, Nk_pad, D_pad), lambda b: (b, 0, 0)),
            const_spec((D_pad, D_pad)),          # Wq  (scale pre-folded)
            const_spec((1, D_pad)),              # bq
            const_spec((D_pad, 2 * D_pad)),      # Wk | Wv (fused)
            const_spec((1, 2 * D_pad)),          # bk | bv
        ]
        inputs = [img_p, radar_p, wq, bq, wkv, bkv]
        if use_mask:
            key_mask = jnp.where(jnp.arange(Nk_pad) < Nk, 0.0, -1e30)
            key_mask = key_mask.astype(jnp.float32).reshape(1, Nk_pad)
            in_specs.append(const_spec((1, Nk_pad)))
            inputs.append(key_mask)

        return pl.pallas_call(
            _make_kernel(use_mask),
            out_shape=jax.ShapeDtypeStruct((B_pad, Nq_pad, D_pad),
                                           img_tokens.dtype),
            grid_spec=pltpu.PrefetchScalarGridSpec(
                num_scalar_prefetch=0,
                grid=(grid_b,),
                in_specs=in_specs,
                out_specs=pl.BlockSpec((block_b, Nq_pad, D_pad),
                                       lambda b: (b, 0, 0)),
            ),
            compiler_params=pltpu.CompilerParams(
                dimension_semantics=("parallel",),
                vmem_limit_bytes=int(vmem_limit_bytes),
            ),
            cost_estimate=cost,
        )(*inputs)

    if single_buffer_weights:
        try:
            out_p = build_and_run(True)
        except Exception:
            # Fallback: default double buffering (only costs extra VMEM).
            out_p = build_and_run(False)
    else:
        out_p = build_and_run(False)

    if (B_pad, Nq_pad, D_pad) == (B, Nq, D):
        return out_p
    return out_p[:B, :Nq, :D]


def _reference(img_tokens, radar_tokens, params):
    D = img_tokens.shape[-1]
    scale = float(D) ** 0.5
    q = img_tokens @ params["wq"] + params["bq"]
    k = radar_tokens @ params["wk"] + params["bk"]
    v = radar_tokens @ params["wv"] + params["bv"]
    attn = jax.nn.softmax(jnp.einsum("bqd,bkd->bqk", q, k) / scale, axis=-1)
    fused = jnp.einsum("bqk,bkd->bqd", attn, v)
    return img_tokens + fused


if __name__ == "__main__":
    # Small shapes consistent with the module's forward:
    # img_tokens (B, Nq, D), radar_tokens (B, Nk, D), embed_dim D.
    B, Nq, Nk, D = 2, 8, 8, 32
    key = jax.random.PRNGKey(0)
    k_img, k_rad, kq, kbq, kk, kbk, kv, kbv = jax.random.split(key, 8)

    img_tokens = jax.random.normal(k_img, (B, Nq, D), dtype=jnp.float32)
    radar_tokens = jax.random.normal(k_rad, (B, Nk, D), dtype=jnp.float32)

    # nn.Linear(D, D) weights, stored pre-transposed to (D_in, D_out);
    # biases as (1, D).
    s = 1.0 / (D ** 0.5)
    raw_params = {
        "wq": jax.random.uniform(kq, (D, D), jnp.float32, -s, s),
        "bq": jax.random.uniform(kbq, (1, D), jnp.float32, -s, s),
        "wk": jax.random.uniform(kk, (D, D), jnp.float32, -s, s),
        "bk": jax.random.uniform(kbk, (1, D), jnp.float32, -s, s),
        "wv": jax.random.uniform(kv, (D, D), jnp.float32, -s, s),
        "bv": jax.random.uniform(kbv, (1, D), jnp.float32, -s, s),
    }

    # One-time weight preparation (padding, K|V fusion, scale folding).
    prepared = prepare_cross_attention_params(raw_params, D)

    out = cross_attention_fusion(img_tokens, radar_tokens, prepared)
    out = jax.block_until_ready(out)
    ref = _reference(img_tokens, radar_tokens, raw_params)
    assert out.shape == (B, Nq, D)
    assert jnp.allclose(out, ref, atol=1e-4, rtol=1e-4), float(
        jnp.max(jnp.abs(out - ref)))

    # Second case exercises batch/query/key padding and the key-mask path.
    B2, Nq2, Nk2 = 3, 5, 6
    k2i, k2r = jax.random.split(jax.random.PRNGKey(1), 2)
    img2 = jax.random.normal(k2i, (B2, Nq2, D), dtype=jnp.float32)
    rad2 = jax.random.normal(k2r, (B2, Nk2, D), dtype=jnp.float32)
    out2 = jax.block_until_ready(cross_attention_fusion(img2, rad2, prepared))
    ref2 = _reference(img2, rad2, raw_params)
    assert out2.shape == (B2, Nq2, D)
    assert jnp.allclose(out2, ref2, atol=1e-4, rtol=1e-4), float(
        jnp.max(jnp.abs(out2 - ref2)))

    print("KERNEL_OK")
</pallas_src>

<mosaic_0001>
module attributes {stable_mosaic.version = 11 : i64} {
  func.func @kernel(%arg0: i32, %arg1: memref<2x8x128xf32, #tpu.memory_space<vmem>>, %arg2: memref<2x8x128xf32, #tpu.memory_space<vmem>>, %arg3: memref<128x128xf32, #tpu.memory_space<vmem>>, %arg4: memref<1x128xf32, #tpu.memory_space<vmem>>, %arg5: memref<128x256xf32, #tpu.memory_space<vmem>>, %arg6: memref<1x256xf32, #tpu.memory_space<vmem>>, %arg7: memref<2x8x128xf32, #tpu.memory_space<vmem>>) attributes {dimension_semantics = [#tpu.dimension_semantics<parallel>], iteration_bounds = array<i64: 1>, scalar_prefetch = 0 : i64, scratch_operands = 0 : i64, tpu.core_type = #tpu.core_type<tc>, window_params = [{transform_indices = @transform_0, window_bounds = array<i64: 2, 8, 128>}, {transform_indices = @transform_1, window_bounds = array<i64: 2, 8, 128>}, {pipeline_mode = #tpu.pipeline_mode<synchronous>, transform_indices = @transform_2, window_bounds = array<i64: 128, 128>}, {pipeline_mode = #tpu.pipeline_mode<synchronous>, transform_indices = @transform_3, window_bounds = array<i64: 1, 128>}, {pipeline_mode = #tpu.pipeline_mode<synchronous>, transform_indices = @transform_4, window_bounds = array<i64: 128, 256>}, {pipeline_mode = #tpu.pipeline_mode<synchronous>, transform_indices = @transform_5, window_bounds = array<i64: 1, 256>}, {transform_indices = @transform_6, window_bounds = array<i64: 2, 8, 128>}]} {
    %c0 = arith.constant 0 : index
    %c0_0 = arith.constant 0 : index
    %c0_1 = arith.constant 0 : index
    %0 = vector.load %arg1[%c0, %c0_0, %c0_1] : memref<2x8x128xf32, #tpu.memory_space<vmem>>, vector<2x8x128xf32>
    %c0_2 = arith.constant 0 : index
    %c0_3 = arith.constant 0 : index
    %c0_4 = arith.constant 0 : index
    %1 = vector.load %arg2[%c0_2, %c0_3, %c0_4] : memref<2x8x128xf32, #tpu.memory_space<vmem>>, vector<2x8x128xf32>
    %2 = vector.shape_cast %0 : vector<2x8x128xf32> to vector<16x128xf32>
    %c0_5 = arith.constant 0 : index
    %c0_6 = arith.constant 0 : index
    %3 = vector.load %arg3[%c0_5, %c0_6] : memref<128x128xf32, #tpu.memory_space<vmem>>, vector<128x128xf32>
    %cst = arith.constant dense<0.000000e+00> : vector<16x128xf32>
    %4 = tpu.matmul %2, %3, %cst {dimension_numbers = #tpu.dot_dimension_numbers<[1], [0], [0], [1], [0, 0, 1, 1], [], []>} : vector<16x128xf32>, vector<128x128xf32>, vector<16x128xf32> -> vector<16x128xf32>
    %c0_7 = arith.constant 0 : index
    %c0_8 = arith.constant 0 : index
    %5 = vector.load %arg4[%c0_7, %c0_8] : memref<1x128xf32, #tpu.memory_space<vmem>>, vector<1x128xf32>
    %6 = vector.broadcast %5 : vector<1x128xf32> to vector<16x128xf32>
    %7 = arith.addf %4, %6 : vector<16x128xf32>
    %8 = vector.shape_cast %1 : vector<2x8x128xf32> to vector<16x128xf32>
    %c0_9 = arith.constant 0 : index
    %c0_10 = arith.constant 0 : index
    %9 = vector.load %arg5[%c0_9, %c0_10] : memref<128x256xf32, #tpu.memory_space<vmem>>, vector<128x256xf32>
    %cst_11 = arith.constant dense<0.000000e+00> : vector<16x256xf32>
    %10 = tpu.matmul %8, %9, %cst_11 {dimension_numbers = #tpu.dot_dimension_numbers<[1], [0], [0], [1], [0, 0, 1, 1], [], []>} : vector<16x128xf32>, vector<128x256xf32>, vector<16x256xf32> -> vector<16x256xf32>
    %c0_12 = arith.constant 0 : index
    %c0_13 = arith.constant 0 : index
    %11 = vector.load %arg6[%c0_12, %c0_13] : memref<1x256xf32, #tpu.memory_space<vmem>>, vector<1x256xf32>
    %12 = vector.broadcast %11 : vector<1x256xf32> to vector<16x256xf32>
    %13 = arith.addf %10, %12 : vector<16x256xf32>
    %14 = vector.shape_cast %7 : vector<16x128xf32> to vector<2x8x128xf32>
    %15 = vector.extract_strided_slice %13 {offsets = [0, 0], sizes = [16, 128], strides = [1, 1]} : vector<16x256xf32> to vector<16x128xf32>
    %16 = vector.shape_cast %15 : vector<16x128xf32> to vector<2x8x128xf32>
    %17 = vector.extract_strided_slice %13 {offsets = [0, 128], sizes = [16, 128], strides = [1, 1]} : vector<16x256xf32> to vector<16x128xf32>
    %18 = vector.shape_cast %17 : vector<16x128xf32> to vector<2x8x128xf32>
    "tpu.trace_start"() <{level = 10 : i32, message = "bqd,bkd->bqk"}> : () -> ()
    %cst_14 = arith.constant dense<0.000000e+00> : vector<2x8x8xf32>
    %19 = tpu.matmul %14, %16, %cst_14 {dimension_numbers = #tpu.dot_dimension_numbers<[2], [2], [1], [1], [0, 0, 0, 1, 1, 1], [0], [0]>} : vector<2x8x128xf32>, vector<2x8x128xf32>, vector<2x8x8xf32> -> vector<2x8x8xf32>
    "tpu.trace_stop"() : () -> ()
    %cst_15 = arith.constant dense<0xFF800000> : vector<2x8xf32>
    %20 = vector.multi_reduction <maximumf>, %19, %cst_15 [2] : vector<2x8x8xf32> to vector<2x8xf32>
    %21 = vector.shape_cast %20 : vector<2x8xf32> to vector<2x8x1xf32>
    %22 = vector.broadcast %21 : vector<2x8x1xf32> to vector<2x8x8xf32>
    %23 = arith.subf %19, %22 : vector<2x8x8xf32>
    %24 = math.exp %23 : vector<2x8x8xf32>
    %cst_16 = arith.constant dense<0.000000e+00> : vector<2x8xf32>
    %25 = vector.multi_reduction <add>, %24, %cst_16 [2] : vector<2x8x8xf32> to vector<2x8xf32>
    %26 = vector.shape_cast %25 : vector<2x8xf32> to vector<2x8x1xf32>
    %27 = tpu.reciprocal %26 {approx = true} : vector<2x8x1xf32> -> vector<2x8x1xf32>
    %28 = arith.mulf %26, %27 : vector<2x8x1xf32>
    %cst_17 = arith.constant 2.000000e+00 : f32
    %29 = vector.broadcast %cst_17 : f32 to vector<2x8x1xf32>
    %30 = arith.subf %29, %28 : vector<2x8x1xf32>
    %31 = arith.mulf %27, %30 : vector<2x8x1xf32>
    "tpu.trace_start"() <{level = 10 : i32, message = "bqk,bkd->bqd"}> : () -> ()
    %cst_18 = arith.constant dense<0.000000e+00> : vector<2x8x128xf32>
    %32 = tpu.matmul %24, %18, %cst_18 {dimension_numbers = #tpu.dot_dimension_numbers<[2], [1], [1], [2], [0, 0, 0, 1, 1, 2], [0], [0]>} : vector<2x8x8xf32>, vector<2x8x128xf32>, vector<2x8x128xf32> -> vector<2x8x128xf32>
    "tpu.trace_stop"() : () -> ()
    %33 = vector.broadcast %31 : vector<2x8x1xf32> to vector<2x8x128xf32>
    %34 = arith.mulf %32, %33 : vector<2x8x128xf32>
    %35 = arith.addf %0, %34 : vector<2x8x128xf32>
    %c0_19 = arith.constant 0 : index
    %c0_20 = arith.constant 0 : index
    %c0_21 = arith.constant 0 : index
    %36 = vector.load %arg7[%c0_19, %c0_20, %c0_21] : memref<2x8x128xf32, #tpu.memory_space<vmem>>, vector<2x8x128xf32>
    tpu.vector_store %arg7[%c0_19, %c0_20, %c0_21], %35 {strides = array<i32>} : memref<2x8x128xf32, #tpu.memory_space<vmem>>, vector<2x8x128xf32>,
    return
  }
  func.func @transform_0(%arg0: i32) -> (i32, i32, i32) {
    %c0_i32 = arith.constant 0 : i32
    %c0_i32_0 = arith.constant 0 : i32
    %c0_i32_1 = arith.constant 0 : i32
    return %arg0, %c0_i32, %c0_i32_0 : i32, i32, i32
  }
  func.func @transform_1(%arg0: i32) -> (i32, i32, i32) {
    %c0_i32 = arith.constant 0 : i32
    %c0_i32_0 = arith.constant 0 : i32
    %c0_i32_1 = arith.constant 0 : i32
    return %arg0, %c0_i32, %c0_i32_0 : i32, i32, i32
  }
  func.func @transform_2(%arg0: i32) -> (i32, i32) {
    %c0_i32 = arith.constant 0 : i32
    %c0_i32_0 = arith.constant 0 : i32
    %c0_i32_1 = arith.constant 0 : i32
    return %c0_i32, %c0_i32_0 : i32, i32
  }
  func.func @transform_3(%arg0: i32) -> (i32, i32) {
    %c0_i32 = arith.constant 0 : i32
    %c0_i32_0 = arith.constant 0 : i32
    %c0_i32_1 = arith.constant 0 : i32
    return %c0_i32, %c0_i32_0 : i32, i32
  }
  func.func @transform_4(%arg0: i32) -> (i32, i32) {
    %c0_i32 = arith.constant 0 : i32
    %c0_i32_0 = arith.constant 0 : i32
    %c0_i32_1 = arith.constant 0 : i32
    return %c0_i32, %c0_i32_0 : i32, i32
  }
  func.func @transform_5(%arg0: i32) -> (i32, i32) {
    %c0_i32 = arith.constant 0 : i32
    %c0_i32_0 = arith.constant 0 : i32
    %c0_i32_1 = arith.constant 0 : i32
    return %c0_i32, %c0_i32_0 : i32, i32
  }
  func.func @transform_6(%arg0: i32) -> (i32, i32, i32) {
    %c0_i32 = arith.constant 0 : i32
    %c0_i32_0 = arith.constant 0 : i32
    %c0_i32_1 = arith.constant 0 : i32
    return %arg0, %c0_i32, %c0_i32_0 : i32, i32, i32
  }
}

module attributes {stable_mosaic.version = 11 : i64} {
  func.func @kernel(%arg0: i32, %arg1: memref<2x8x128xf32, #tpu.memory_space<vmem>>, %arg2: memref<2x8x128xf32, #tpu.memory_space<vmem>>, %arg3: memref<128x128xf32, #tpu.memory_space<vmem>>, %arg4: memref<1x128xf32, #tpu.memory_space<vmem>>, %arg5: memref<128x256xf32, #tpu.memory_space<vmem>>, %arg6: memref<1x256xf32, #tpu.memory_space<vmem>>, %arg7: memref<2x8x128xf32, #tpu.memory_space<vmem>>) attributes {dimension_semantics = [#tpu.dimension_semantics<parallel>], iteration_bounds = array<i64: 1>, scalar_prefetch = 0 : i64, scratch_operands = 0 : i64, tpu.core_type = #tpu.core_type<tc>, window_params = [{transform_indices = @transform_0, window_bounds = array<i64: 2, 8, 128>}, {transform_indices = @transform_1, window_bounds = array<i64: 2, 8, 128>}, {pipeline_mode = #tpu.pipeline_mode<synchronous>, transform_indices = @transform_2, window_bounds = array<i64: 128, 128>}, {pipeline_mode = #tpu.pipeline_mode<synchronous>, transform_indices = @transform_3, window_bounds = array<i64: 1, 128>}, {pipeline_mode = #tpu.pipeline_mode<synchronous>, transform_indices = @transform_4, window_bounds = array<i64: 128, 256>}, {pipeline_mode = #tpu.pipeline_mode<synchronous>, transform_indices = @transform_5, window_bounds = array<i64: 1, 256>}, {transform_indices = @transform_6, window_bounds = array<i64: 2, 8, 128>}]} {
    %c0 = arith.constant 0 : index
    %c0_0 = arith.constant 0 : index
    %c0_1 = arith.constant 0 : index
    %0 = vector.load %arg1[%c0, %c0_0, %c0_1] : memref<2x8x128xf32, #tpu.memory_space<vmem>>, vector<2x8x128xf32>
    %c0_2 = arith.constant 0 : index
    %c0_3 = arith.constant 0 : index
    %c0_4 = arith.constant 0 : index
    %1 = vector.load %arg2[%c0_2, %c0_3, %c0_4] : memref<2x8x128xf32, #tpu.memory_space<vmem>>, vector<2x8x128xf32>
    %2 = vector.shape_cast %0 : vector<2x8x128xf32> to vector<16x128xf32>
    %c0_5 = arith.constant 0 : index
    %c0_6 = arith.constant 0 : index
    %3 = vector.load %arg3[%c0_5, %c0_6] : memref<128x128xf32, #tpu.memory_space<vmem>>, vector<128x128xf32>
    %cst = arith.constant dense<0.000000e+00> : vector<16x128xf32>
    %4 = tpu.matmul %2, %3, %cst {dimension_numbers = #tpu.dot_dimension_numbers<[1], [0], [0], [1], [0, 0, 1, 1], [], []>} : vector<16x128xf32>, vector<128x128xf32>, vector<16x128xf32> -> vector<16x128xf32>
    %c0_7 = arith.constant 0 : index
    %c0_8 = arith.constant 0 : index
    %5 = vector.load %arg4[%c0_7, %c0_8] : memref<1x128xf32, #tpu.memory_space<vmem>>, vector<1x128xf32>
    %6 = vector.broadcast %5 : vector<1x128xf32> to vector<16x128xf32>
    %7 = arith.addf %4, %6 : vector<16x128xf32>
    %8 = vector.shape_cast %1 : vector<2x8x128xf32> to vector<16x128xf32>
    %c0_9 = arith.constant 0 : index
    %c0_10 = arith.constant 0 : index
    %9 = vector.load %arg5[%c0_9, %c0_10] : memref<128x256xf32, #tpu.memory_space<vmem>>, vector<128x256xf32>
    %cst_11 = arith.constant dense<0.000000e+00> : vector<16x256xf32>
    %10 = tpu.matmul %8, %9, %cst_11 {dimension_numbers = #tpu.dot_dimension_numbers<[1], [0], [0], [1], [0, 0, 1, 1], [], []>} : vector<16x128xf32>, vector<128x256xf32>, vector<16x256xf32> -> vector<16x256xf32>
    %c0_12 = arith.constant 0 : index
    %c0_13 = arith.constant 0 : index
    %11 = vector.load %arg6[%c0_12, %c0_13] : memref<1x256xf32, #tpu.memory_space<vmem>>, vector<1x256xf32>
    %12 = vector.broadcast %11 : vector<1x256xf32> to vector<16x256xf32>
    %13 = arith.addf %10, %12 : vector<16x256xf32>
    %14 = vector.shape_cast %7 : vector<16x128xf32> to vector<2x8x128xf32>
    %15 = vector.extract_strided_slice %13 {offsets = [0, 0], sizes = [16, 128], strides = [1, 1]} : vector<16x256xf32> to vector<16x128xf32>
    %16 = vector.shape_cast %15 : vector<16x128xf32> to vector<2x8x128xf32>
    %17 = vector.extract_strided_slice %13 {offsets = [0, 128], sizes = [16, 128], strides = [1, 1]} : vector<16x256xf32> to vector<16x128xf32>
    %18 = vector.shape_cast %17 : vector<16x128xf32> to vector<2x8x128xf32>
    "tpu.trace_start"() <{level = 10 : i32, message = "bqd,bkd->bqk"}> : () -> ()
    %cst_14 = arith.constant dense<0.000000e+00> : vector<2x8x8xf32>
    %19 = tpu.matmul %14, %16, %cst_14 {dimension_numbers = #tpu.dot_dimension_numbers<[2], [2], [1], [1], [0, 0, 0, 1, 1, 1], [0], [0]>} : vector<2x8x128xf32>, vector<2x8x128xf32>, vector<2x8x8xf32> -> vector<2x8x8xf32>
    "tpu.trace_stop"() : () -> ()
    %cst_15 = arith.constant dense<0xFF800000> : vector<2x8xf32>
    %20 = vector.multi_reduction <maximumf>, %19, %cst_15 [2] : vector<2x8x8xf32> to vector<2x8xf32>
    %21 = vector.shape_cast %20 : vector<2x8xf32> to vector<2x8x1xf32>
    %22 = vector.broadcast %21 : vector<2x8x1xf32> to vector<2x8x8xf32>
    %23 = arith.subf %19, %22 : vector<2x8x8xf32>
    %24 = math.exp %23 : vector<2x8x8xf32>
    %cst_16 = arith.constant dense<0.000000e+00> : vector<2x8xf32>
    %25 = vector.multi_reduction <add>, %24, %cst_16 [2] : vector<2x8x8xf32> to vector<2x8xf32>
    %26 = vector.shape_cast %25 : vector<2x8xf32> to vector<2x8x1xf32>
    %27 = tpu.reciprocal %26 {approx = true} : vector<2x8x1xf32> -> vector<2x8x1xf32>
    %28 = arith.mulf %26, %27 : vector<2x8x1xf32>
    %cst_17 = arith.constant 2.000000e+00 : f32
    %29 = vector.broadcast %cst_17 : f32 to vector<2x8x1xf32>
    %30 = arith.subf %29, %28 : vector<2x8x1xf32>
    %31 = arith.mulf %27, %30 : vector<2x8x1xf32>
    "tpu.trace_start"() <{level = 10 : i32, message = "bqk,bkd->bqd"}> : () -> ()
    %cst_18 = arith.constant dense<0.000000e+00> : vector<2x8x128xf32>
    %32 = tpu.matmul %24, %18, %cst_18 {dimension_numbers = #tpu.dot_dimension_numbers<[2], [1], [1], [2], [0, 0, 0, 1, 1, 2], [0], [0]>} : vector<2x8x8xf32>, vector<2x8x128xf32>, vector<2x8x128xf32> -> vector<2x8x128xf32>
    "tpu.trace_stop"() : () -> ()
    %33 = vector.broadcast %31 : vector<2x8x1xf32> to vector<2x8x128xf32>
    %34 = arith.mulf %32, %33 : vector<2x8x128xf32>
    %35 = arith.addf %0, %34 : vector<2x8x128xf32>
    %c0_19 = arith.constant 0 : index
    %c0_20 = arith.constant 0 : index
    %c0_21 = arith.constant 0 : index
    %36 = vector.load %arg7[%c0_19, %c0_20, %c0_21] : memref<2x8x128xf32, #tpu.memory_space<vmem>>, vector<2x8x128xf32>
    tpu.vector_store %arg7[%c0_19, %c0_20, %c0_21], %35 {strides = array<i32>} : memref<2x8x128xf32, #tpu.memory_space<vmem>>, vector<2x8x128xf32>,
    return
  }
  func.func @transform_0(%arg0: i32) -> (i32, i32, i32) {
    %c0_i32 = arith.constant 0 : i32
    %c0_i32_0 = arith.constant 0 : i32
    %c0_i32_1 = arith.constant 0 : i32
    return %arg0, %c0_i32, %c0_i32_0 : i32, i32, i32
  }
  func.func @transform_1(%arg0: i32) -> (i32, i32, i32) {
    %c0_i32 = arith.constant 0 : i32
    %c0_i32_0 = arith.constant 0 : i32
    %c0_i32_1 = arith.constant 0 : i32
    return %arg0, %c0_i32, %c0_i32_0 : i32, i32, i32
  }
  func.func @transform_2(%arg0: i32) -> (i32, i32) {
    %c0_i32 = arith.constant 0 : i32
    %c0_i32_0 = arith.constant 0 : i32
    %c0_i32_1 = arith.constant 0 : i32
    return %c0_i32, %c0_i32_0 : i32, i32
  }
  func.func @transform_3(%arg0: i32) -> (i32, i32) {
    %c0_i32 = arith.constant 0 : i32
    %c0_i32_0 = arith.constant 0 : i32
    %c0_i32_1 = arith.constant 0 : i32
    return %c0_i32, %c0_i32_0 : i32, i32
  }
  func.func @transform_4(%arg0: i32) -> (i32, i32) {
    %c0_i32 = arith.constant 0 : i32
    %c0_i32_0 = arith.constant 0 : i32
    %c0_i32_1 = arith.constant 0 : i32
    return %c0_i32, %c0_i32_0 : i32, i32
  }
  func.func @transform_5(%arg0: i32) -> (i32, i32) {
    %c0_i32 = arith.constant 0 : i32
    %c0_i32_0 = arith.constant 0 : i32
    %c0_i32_1 = arith.constant 0 : i32
    return %c0_i32, %c0_i32_0 : i32, i32
  }
  func.func @transform_6(%arg0: i32) -> (i32, i32, i32) {
    %c0_i32 = arith.constant 0 : i32
    %c0_i32_0 = arith.constant 0 : i32
    %c0_i32_1 = arith.constant 0 : i32
    return %arg0, %c0_i32, %c0_i32_0 : i32, i32, i32
  }
}

</mosaic_0001>

<llo_original>
// kernel: tpu_custom_call.1
$region0: #{tpu_custom_call.1}
  #allocation0 [shape = 'u32[]', space=smem, size = 0x4, offset = 0x4, fixed_abs, tag = 'smem constant byte address 0x4 - core index']
  #allocation1 [shape = 'u32[144,128]{1,0:T(1,128)}', space=vmem, size = 0x12000, scoped, tag = 'internal scratch']
  %s0 = inlined_call_operand.hbm [shape: f32[2,8,128], index: 0, kind: input, shape index: {}]
  %s1 = inlined_call_operand.hbm [shape: f32[2,8,128], index: 1, kind: input, shape index: {}]
  %s2 = inlined_call_operand.hbm [shape: f32[128,128], index: 2, kind: input, shape index: {}]
  %s3 = inlined_call_operand.hbm [shape: f32[1,128], index: 3, kind: input, shape index: {}]
  %s4 = inlined_call_operand.hbm [shape: f32[128,256], index: 4, kind: input, shape index: {}]
  %s5 = inlined_call_operand.hbm [shape: f32[1,256], index: 5, kind: input, shape index: {}]
  %s6 = inlined_call_operand.hbm [shape: f32[2,8,128], index: 6, kind: output, shape index: {}]
  %s7 = sld [smem:[#allocation0]]
  $region58: #{tpu_custom_call.1} parent=0
    _
  %s9 = ssub.s32 1, %s7
  %s10 = scalar_select 0, %s9, %s7
  $region1: #{tpu_custom_call.1} parent=0
    #allocation2 [shape = 'u8[8192]{0}', space=vmem, size = 0x2000, scoped, tag = 'input window, operand 0, single buffered']
    #allocation3 [shape = 's32[1]{0}', space=sflag, size = 0x4, scoped, tag = 'scoped memory for tpu_custom_call.1']
    #allocation4 [shape = 's32[1]{0}', space=sflag, size = 0x4, scoped, tag = 'scoped memory for tpu_custom_call.1']
    #allocation5 [shape = 'u8[8192]{0}', space=vmem, size = 0x2000, scoped, tag = 'input window, operand 1, single buffered']
    #allocation6 [shape = 's32[1]{0}', space=sflag, size = 0x4, scoped, tag = 'scoped memory for tpu_custom_call.1']
    #allocation7 [shape = 'u8[65536]{0}', space=vmem, size = 0x10000, scoped, tag = 'input window, operand 2, single buffered']
    #allocation8 [shape = 'u8[512]{0}', space=vmem, size = 0x400, scoped, tag = 'input window, operand 3, single buffered']
    #allocation9 [shape = 's32[1]{0}', space=sflag, size = 0x4, scoped, tag = 'scoped memory for tpu_custom_call.1']
    #allocation10 [shape = 'u8[131072]{0}', space=vmem, size = 0x20000, scoped, tag = 'input window, operand 4, single buffered']
    #allocation11 [shape = 'u8[1024]{0}', space=vmem, size = 0x400, scoped, tag = 'input window, operand 5, single buffered']
    #allocation12 [shape = 's32[1]{0}', space=sflag, size = 0x4, scoped, tag = 'scoped memory for tpu_custom_call.1']
    #allocation13 [shape = 'u8[8192]{0}', space=vmem, size = 0x2000, scoped, tag = 'output window, operand 0, single buffered']
    %11 = vsyncpa [#allocation3], 0
    %12 = vsyncpa [#allocation6], 0
    %13 = vsyncpa [#allocation9], 0
    %14 = vsyncpa [#allocation12], 0
    %15 = vsyncpa [#allocation4], 0
    // Predicated region
    $region2: #{tpu_custom_call.1} parent=1 // pred_check
      _
    $region3: #{tpu_custom_call.1} parent=1 // pred_check_branch
      %17 = sbr.rel (0) target = $region5
    $region4: #{tpu_custom_call.1} parent=1 // pred_region
      %s19 = ssub.s32 256, 256
      %20 = vsyncadd [#allocation3], %s19
      %s21 = sshll.u32 [#allocation2], 4
      %s22 = int_to_ptr.vmem [resolvable:$true] %s21
      %27 = dma.hbm_to_vmem [thread:$0]  %s0, 256, %s22, [#allocation3], 128, 128, 8
    $region5: #{tpu_custom_call.1} parent=1 // pred_fallthru
      _
    // Predicated region
    $region6: #{tpu_custom_call.1} parent=1 // pred_check
      _
    $region7: #{tpu_custom_call.1} parent=1 // pred_check_branch
      %29 = sbr.rel (0) target = $region9
    $region8: #{tpu_custom_call.1} parent=1 // pred_region
      %s31 = ssub.s32 256, 256
      %32 = vsyncadd [#allocation6], %s31
      %s33 = sshll.u32 [#allocation5], 4
      %s34 = int_to_ptr.vmem [resolvable:$true] %s33
      %39 = dma.hbm_to_vmem [thread:$0]  %s1, 256, %s34, [#allocation6], 128, 128, 8
    $region9: #{tpu_custom_call.1} parent=1 // pred_fallthru
      _
    // Predicated region
    $region10: #{tpu_custom_call.1} parent=1 // pred_check
      _
    $region11: #{tpu_custom_call.1} parent=1 // pred_check_branch
      %41 = sbr.rel (0) target = $region13
    $region12: #{tpu_custom_call.1} parent=1 // pred_region
      %s43 = ssub.s32 2048, 2048
      %44 = vsyncadd [#allocation6], %s43
      %s45 = sshll.u32 [#allocation7], 4
      %s46 = int_to_ptr.vmem [resolvable:$true] %s45
      %51 = dma.hbm_to_vmem [thread:$0]  %s2, 2048, %s46, [#allocation6], 128, 128, 8
    $region13: #{tpu_custom_call.1} parent=1 // pred_fallthru
      _
    // Predicated region
    $region14: #{tpu_custom_call.1} parent=1 // pred_check
      _
    $region15: #{tpu_custom_call.1} parent=1 // pred_check_branch
      %53 = sbr.rel (0) target = $region17
    $region16: #{tpu_custom_call.1} parent=1 // pred_region
      %s55 = ssub.s32 16, 16
      %56 = vsyncadd [#allocation9], %s55
      %s58 = sshll.u32 [#allocation8], 4
      %s59 = int_to_ptr.vmem [resolvable:$true] %s58
      %61 = dma.hbm_to_vmem [thread:$0]  %s3, 16, %s59, [#allocation9]
    $region17: #{tpu_custom_call.1} parent=1 // pred_fallthru
      _
    // Predicated region
    $region18: #{tpu_custom_call.1} parent=1 // pred_check
      _
    $region19: #{tpu_custom_call.1} parent=1 // pred_check_branch
      %63 = sbr.rel (0) target = $region21
    $region20: #{tpu_custom_call.1} parent=1 // pred_region
      %s65 = ssub.s32 4096, 4096
      %66 = vsyncadd [#allocation9], %s65
      %s67 = sshll.u32 [#allocation10], 4
      %s68 = int_to_ptr.vmem [resolvable:$true] %s67
      %73 = dma.hbm_to_vmem [thread:$0]  %s4, 4096, %s68, [#allocation9], 256, 256, 16
    $region21: #{tpu_custom_call.1} parent=1 // pred_fallthru
      _
    // Predicated region
    $region22: #{tpu_custom_call.1} parent=1 // pred_check
      _
    $region23: #{tpu_custom_call.1} parent=1 // pred_check_branch
      %75 = sbr.rel (0) target = $region25
    $region24: #{tpu_custom_call.1} parent=1 // pred_region
      %s77 = ssub.s32 32, 32
      %78 = vsyncadd [#allocation12], %s77
      %s80 = sshll.u32 [#allocation11], 4
      %s81 = int_to_ptr.vmem [resolvable:$true] %s80
      %83 = dma.hbm_to_vmem [thread:$0]  %s5, 32, %s81, [#allocation12]
    $region25: #{tpu_custom_call.1} parent=1 // pred_fallthru
      _
    // Predicated region
    $region26: #{tpu_custom_call.1} parent=1 // pred_check
      _
    $region27: #{tpu_custom_call.1} parent=1 // pred_check_branch
      %85 = sbr.rel (0) target = $region29
    $region28: #{tpu_custom_call.1} parent=1 // pred_region
      %86 = dma.done [#allocation3], 256
    $region29: #{tpu_custom_call.1} parent=1 // pred_fallthru
      _
    // Predicated region
    $region30: #{tpu_custom_call.1} parent=1 // pred_check
      _
    $region31: #{tpu_custom_call.1} parent=1 // pred_check_branch
      %88 = sbr.rel (0) target = $region33
    $region32: #{tpu_custom_call.1} parent=1 // pred_region
      %89 = dma.done [#allocation6], 256
    $region33: #{tpu_custom_call.1} parent=1 // pred_fallthru
      _
    // Predicated region
    $region34: #{tpu_custom_call.1} parent=1 // pred_check
      _
    $region35: #{tpu_custom_call.1} parent=1 // pred_check_branch
      %91 = sbr.rel (0) target = $region37
    $region36: #{tpu_custom_call.1} parent=1 // pred_region
      %92 = dma.done [#allocation6], 2048
    $region37: #{tpu_custom_call.1} parent=1 // pred_fallthru
      _
    // Predicated region
    $region38: #{tpu_custom_call.1} parent=1 // pred_check
      _
    $region39: #{tpu_custom_call.1} parent=1 // pred_check_branch
      %94 = sbr.rel (0) target = $region41
    $region40: #{tpu_custom_call.1} parent=1 // pred_region
      %95 = dma.done [#allocation9], 16
    $region41: #{tpu_custom_call.1} parent=1 // pred_fallthru
      _
    // Predicated region
    $region42: #{tpu_custom_call.1} parent=1 // pred_check
      _
    $region43: #{tpu_custom_call.1} parent=1 // pred_check_branch
      %97 = sbr.rel (0) target = $region45
    $region44: #{tpu_custom_call.1} parent=1 // pred_region
      %98 = dma.done [#allocation9], 4096
    $region45: #{tpu_custom_call.1} parent=1 // pred_fallthru
      _
    // Predicated region
    $region46: #{tpu_custom_call.1} parent=1 // pred_check
      _
    $region47: #{tpu_custom_call.1} parent=1 // pred_check_branch
      %100 = sbr.rel (0) target = $region49
    $region48: #{tpu_custom_call.1} parent=1 // pred_region
      %101 = dma.done [#allocation12], 32
    $region49: #{tpu_custom_call.1} parent=1 // pred_fallthru
      _
    %v102 = vld [vmem:[#allocation2] sm:$0xff]
    %v103 = vld [vmem:[#allocation2 + $0x8] sm:$0xff]
    %v104 = vld [vmem:[#allocation5] sm:$0xff]
    %v105 = vld [vmem:[#allocation5 + $0x8] sm:$0xff]
    %v106 = vld [vmem:[#allocation7] sm:$0xff]
    %v107 = vld [vmem:[#allocation7 + $0x8] sm:$0xff]
    %v108 = vld [vmem:[#allocation7 + $0x10] sm:$0xff]
    %v109 = vld [vmem:[#allocation7 + $0x18] sm:$0xff]
    %v110 = vld [vmem:[#allocation7 + $0x20] sm:$0xff]
    %v111 = vld [vmem:[#allocation7 + $0x28] sm:$0xff]
    %v112 = vld [vmem:[#allocation7 + $0x30] sm:$0xff]
    %v113 = vld [vmem:[#allocation7 + $0x38] sm:$0xff]
    %v114 = vld [vmem:[#allocation7 + $0x40] sm:$0xff]
    %v115 = vld [vmem:[#allocation7 + $0x48] sm:$0xff]
    %v116 = vld [vmem:[#allocation7 + $0x50] sm:$0xff]
    %v117 = vld [vmem:[#allocation7 + $0x58] sm:$0xff]
    %v118 = vld [vmem:[#allocation7 + $0x60] sm:$0xff]
    %v119 = vld [vmem:[#allocation7 + $0x68] sm:$0xff]
    %v120 = vld [vmem:[#allocation7 + $0x70] sm:$0xff]
    %v121 = vld [vmem:[#allocation7 + $0x78] sm:$0xff]
    %v122 = vld [vmem:[#allocation8] sm:$0x1]
    %v124 = vlaneseq
    %v125 = vshrl.u32 %v124, 7
    %v126 = vsub.s32 0, %v125
    %v127 = vrot.slane %v122, %v126
    %129 = vmatprep.subr.mxu0 0.0
    %130 = vmatpush1.msra.mxu0 %v106
    %131 = vmatprep.subr.mxu0 0.0
    %132 = vmatpush1.msra.mxu0 %v107
    %133 = vmatprep.subr.mxu0 0.0
    %134 = vmatpush1.msra.mxu0 %v108
    %135 = vmatprep.subr.mxu0 0.0
    %136 = vmatpush1.msra.mxu0 %v109
    %137 = vmatprep.subr.mxu0 0.0
    %138 = vmatpush1.msra.mxu0 %v110
    %139 = vmatprep.subr.mxu0 0.0
    %140 = vmatpush1.msra.mxu0 %v111
    %141 = vmatprep.subr.mxu0 0.0
    %142 = vmatpush1.msra.mxu0 %v112
    %143 = vmatprep.subr.mxu0 0.0
    %144 = vmatpush1.msra.mxu0 %v113
    %145 = vmatprep.subr.mxu0 0.0
    %146 = vmatpush1.msra.mxu0 %v114
    %147 = vmatprep.subr.mxu0 0.0
    %148 = vmatpush1.msra.mxu0 %v115
    %149 = vmatprep.subr.mxu0 0.0
    %150 = vmatpush1.msra.mxu0 %v116
    %151 = vmatprep.subr.mxu0 0.0
    %152 = vmatpush1.msra.mxu0 %v117
    %153 = vmatprep.subr.mxu0 0.0
    %154 = vmatpush1.msra.mxu0 %v118
    %155 = vmatprep.subr.mxu0 0.0
    %156 = vmatpush1.msra.mxu0 %v119
    %157 = vmatprep.subr.mxu0 0.0
    %158 = vmatpush1.msra.mxu0 %v120
    %159 = vmatprep.subr.mxu0 0.0
    %160 = vmatpush1.msra.mxu0 %v121
    %161 = vmatprep.subr.mxu0 0.0
    %162 = vmatpush1.msra.mxu0 0.0
    %163 = vmatprep.subr.mxu0 0.0
    %164 = vmatpush1.msra.mxu0 0.0
    %165 = vmatprep.subr.mxu0 0.0
    %166 = vmatpush1.msra.mxu0 0.0
    %167 = vmatprep.subr.mxu0 0.0
    %168 = vmatpush1.msra.mxu0 0.0
    %169 = vmatprep.subr.mxu0 0.0
    %170 = vmatpush1.msra.mxu0 0.0
    %171 = vmatprep.subr.mxu0 0.0
    %172 = vmatpush1.msra.mxu0 0.0
    %173 = vmatprep.subr.mxu0 0.0
    %174 = vmatpush1.msra.mxu0 0.0
    %175 = vmatprep.subr.mxu0 0.0
    %176 = vmatpush1.msra.mxu0 0.0
    %177 = vmatprep.subr.mxu0 0.0
    %178 = vmatpush1.msra.mxu0 0.0
    %179 = vmatprep.subr.mxu0 0.0
    %180 = vmatpush1.msra.mxu0 0.0
    %181 = vmatprep.subr.mxu0 0.0
    %182 = vmatpush1.msra.mxu0 0.0
    %183 = vmatprep.subr.mxu0 0.0
    %184 = vmatpush1.msra.mxu0 0.0
    %185 = vmatprep.subr.mxu0 0.0
    %186 = vmatpush1.msra.mxu0 0.0
    %187 = vmatprep.subr.mxu0 0.0
    %188 = vmatpush1.msra.mxu0 0.0
    %189 = vmatprep.subr.mxu0 0.0
    %190 = vmatpush1.msra.mxu0 0.0
    %191 = vmatprep.subr.mxu0 0.0
    %192 = vmatpush1.msra.mxu0 0.0
    %193 = vmatprep.mubr.f32.mxu0 0.0
    %194 = vmatmul.mubr.f32.gmra.mrb[0].mxu0 %v102
    %v195 = vpop.f32.mrb[0].mxu0
    %v196 = vadd.f32 %v127, %v195
    %v197 = vpop.f32.mrb[0].mxu0
    %198 = vmatprep.mubr.f32.mxu0 0.0
    %199 = vmatmul.mubr.f32.gmra.mrb[0].mxu0 %v103
    %v200 = vpop.f32.mrb[0].mxu0
    %v201 = vadd.f32 %v127, %v200
    %v202 = vpop.f32.mrb[0].mxu0
    %203 = vdwg.mxu0
    %v204 = vld [vmem:[#allocation10] sm:$0xff]
    %v205 = vld [vmem:[#allocation10 + $0x8] sm:$0xff]
    %v206 = vld [vmem:[#allocation10 + $0x10] sm:$0xff]
    %v207 = vld [vmem:[#allocation10 + $0x18] sm:$0xff]
    %v208 = vld [vmem:[#allocation10 + $0x20] sm:$0xff]
    %v209 = vld [vmem:[#allocation10 + $0x28] sm:$0xff]
    %v210 = vld [vmem:[#allocation10 + $0x30] sm:$0xff]
    %v211 = vld [vmem:[#allocation10 + $0x38] sm:$0xff]
    %v212 = vld [vmem:[#allocation10 + $0x40] sm:$0xff]
    %v213 = vld [vmem:[#allocation10 + $0x48] sm:$0xff]
    %v214 = vld [vmem:[#allocation10 + $0x50] sm:$0xff]
    %v215 = vld [vmem:[#allocation10 + $0x58] sm:$0xff]
    %v216 = vld [vmem:[#allocation10 + $0x60] sm:$0xff]
    %v217 = vld [vmem:[#allocation10 + $0x68] sm:$0xff]
    %v218 = vld [vmem:[#allocation10 + $0x70] sm:$0xff]
    %v219 = vld [vmem:[#allocation10 + $0x78] sm:$0xff]
    %v220 = vld [vmem:[#allocation10 + $0x80] sm:$0xff]
    %v221 = vld [vmem:[#allocation10 + $0x88] sm:$0xff]
    %v222 = vld [vmem:[#allocation10 + $0x90] sm:$0xff]
    %v223 = vld [vmem:[#allocation10 + $0x98] sm:$0xff]
    %v224 = vld [vmem:[#allocation10 + $0xa0] sm:$0xff]
    %v225 = vld [vmem:[#allocation10 + $0xa8] sm:$0xff]
    %v226 = vld [vmem:[#allocation10 + $0xb0] sm:$0xff]
    %v227 = vld [vmem:[#allocation10 + $0xb8] sm:$0xff]
    %v228 = vld [vmem:[#allocation10 + $0xc0] sm:$0xff]
    %v229 = vld [vmem:[#allocation10 + $0xc8] sm:$0xff]
    %v230 = vld [vmem:[#allocation10 + $0xd0] sm:$0xff]
    %v231 = vld [vmem:[#allocation10 + $0xd8] sm:$0xff]
    %v232 = vld [vmem:[#allocation10 + $0xe0] sm:$0xff]
    %v233 = vld [vmem:[#allocation10 + $0xe8] sm:$0xff]
    %v234 = vld [vmem:[#allocation10 + $0xf0] sm:$0xff]
    %v235 = vld [vmem:[#allocation10 + $0xf8] sm:$0xff]
    %v236 = vld [vmem:[#allocation11] sm:$0x3]
    %v238 = vlaneseq
    %v239 = vshrl.u32 %v238, 7
    %v240 = vsub.s32 0, %v239
    %v241 = vrot.slane %v236, %v240
    %v242 = vlaneseq
    %v243 = vshrl.u32 %v242, 7
    %v244 = vsub.s32 1, %v243
    %v245 = vrot.slane %v236, %v244
    %248 = vmatprep.subr.mxu0 %v205
    %249 = vmatpush1.msra.mxu0 %v204
    %250 = vmatprep.subr.mxu0 %v207
    %251 = vmatpush1.msra.mxu0 %v206
    %252 = vmatprep.subr.mxu0 %v209
    %253 = vmatpush1.msra.mxu0 %v208
    %254 = vmatprep.subr.mxu0 %v211
    %255 = vmatpush1.msra.mxu0 %v210
    %256 = vmatprep.subr.mxu0 %v213
    %257 = vmatpush1.msra.mxu0 %v212
    %258 = vmatprep.subr.mxu0 %v215
    %259 = vmatpush1.msra.mxu0 %v214
    %260 = vmatprep.subr.mxu0 %v217
    %261 = vmatpush1.msra.mxu0 %v216
    %262 = vmatprep.subr.mxu0 %v219
    %263 = vmatpush1.msra.mxu0 %v218
    %264 = vmatprep.subr.mxu0 %v221
    %265 = vmatpush1.msra.mxu0 %v220
    %266 = vmatprep.subr.mxu0 %v223
    %267 = vmatpush1.msra.mxu0 %v222
    %268 = vmatprep.subr.mxu0 %v225
    %269 = vmatpush1.msra.mxu0 %v224
    %270 = vmatprep.subr.mxu0 %v227
    %271 = vmatpush1.msra.mxu0 %v226
    %272 = vmatprep.subr.mxu0 %v229
    %273 = vmatpush1.msra.mxu0 %v228
    %274 = vmatprep.subr.mxu0 %v231
    %275 = vmatpush1.msra.mxu0 %v230
    %276 = vmatprep.subr.mxu0 %v233
    %277 = vmatpush1.msra.mxu0 %v232
    %278 = vmatprep.subr.mxu0 %v235
    %279 = vmatpush1.msra.mxu0 %v234
    %280 = vmatprep.subr.mxu0 0.0
    %281 = vmatpush1.msra.mxu0 0.0
    %282 = vmatprep.subr.mxu0 0.0
    %283 = vmatpush1.msra.mxu0 0.0
    %284 = vmatprep.subr.mxu0 0.0
    %285 = vmatpush1.msra.mxu0 0.0
    %286 = vmatprep.subr.mxu0 0.0
    %287 = vmatpush1.msra.mxu0 0.0
    %288 = vmatprep.subr.mxu0 0.0
    %289 = vmatpush1.msra.mxu0 0.0
    %290 = vmatprep.subr.mxu0 0.0
    %291 = vmatpush1.msra.mxu0 0.0
    %292 = vmatprep.subr.mxu0 0.0
    %293 = vmatpush1.msra.mxu0 0.0
    %294 = vmatprep.subr.mxu0 0.0
    %295 = vmatpush1.msra.mxu0 0.0
    %296 = vmatprep.subr.mxu0 0.0
    %297 = vmatpush1.msra.mxu0 0.0
    %298 = vmatprep.subr.mxu0 0.0
    %299 = vmatpush1.msra.mxu0 0.0
    %300 = vmatprep.subr.mxu0 0.0
    %301 = vmatpush1.msra.mxu0 0.0
    %302 = vmatprep.subr.mxu0 0.0
    %303 = vmatpush1.msra.mxu0 0.0
    %304 = vmatprep.subr.mxu0 0.0
    %305 = vmatpush1.msra.mxu0 0.0
    %306 = vmatprep.subr.mxu0 0.0
    %307 = vmatpush1.msra.mxu0 0.0
    %308 = vmatprep.subr.mxu0 0.0
    %309 = vmatpush1.msra.mxu0 0.0
    %310 = vmatprep.subr.mxu0 0.0
    %311 = vmatpush1.msra.mxu0 0.0
    %312 = vmatprep.mubr.f32.mxu0 0.0
    %313 = vmatmul.mubr.f32.gmra.mrb[0].mxu0 %v104
    %v314 = vpop.f32.mrb[0].mxu0
    %v315 = vadd.f32 %v241, %v314
    %v316 = vpop.f32.mrb[0].mxu0
    %v317 = vadd.f32 %v245, %v316
    %318 = vmatprep.mubr.f32.mxu0 0.0
    %319 = vmatmul.mubr.f32.gmra.mrb[0].mxu0 %v105
    %v320 = vpop.f32.mrb[0].mxu0
    %v321 = vadd.f32 %v241, %v320
    %v322 = vpop.f32.mrb[0].mxu0
    %v323 = vadd.f32 %v245, %v322
    %324 = vdwg.mxu0
    %325 = vmatprep.subr.mxu0 0.0
    %326 = vmatpush1.xpose.msra.mxu0 %v315
    %327 = vmatprep.subr.mxu0 0.0
    %328 = vmatpush1.xpose.msra.mxu0 0.0
    %329 = vmatprep.subr.mxu0 0.0
    %330 = vmatpush1.xpose.msra.mxu0 0.0
    %331 = vmatprep.subr.mxu0 0.0
    %332 = vmatpush1.xpose.msra.mxu0 0.0
    %333 = vmatprep.subr.mxu0 0.0
    %334 = vmatpush1.xpose.msra.mxu0 0.0
    %335 = vmatprep.subr.mxu0 0.0
    %336 = vmatpush1.xpose.msra.mxu0 0.0
    %337 = vmatprep.subr.mxu0 0.0
    %338 = vmatpush1.xpose.msra.mxu0 0.0
    %339 = vmatprep.subr.mxu0 0.0
    %340 = vmatpush1.xpose.msra.mxu0 0.0
    %341 = vmatprep.subr.mxu0 0.0
    %342 = vmatpush1.xpose.msra.mxu0 0.0
    %343 = vmatprep.subr.mxu0 0.0
    %344 = vmatpush1.xpose.msra.mxu0 0.0
    %345 = vmatprep.subr.mxu0 0.0
    %346 = vmatpush1.xpose.msra.mxu0 0.0
    %347 = vmatprep.subr.mxu0 0.0
    %348 = vmatpush1.xpose.msra.mxu0 0.0
    %349 = vmatprep.subr.mxu0 0.0
    %350 = vmatpush1.xpose.msra.mxu0 0.0
    %351 = vmatprep.subr.mxu0 0.0
    %352 = vmatpush1.xpose.msra.mxu0 0.0
    %353 = vmatprep.subr.mxu0 0.0
    %354 = vmatpush1.xpose.msra.mxu0 0.0
    %355 = vmatprep.subr.mxu0 0.0
    %356 = vmatpush1.xpose.msra.mxu0 0.0
    %357 = vmatprep.subr.mxu0 0.0
    %358 = vmatpush1.xpose.msra.mxu0 0.0
    %359 = vmatprep.subr.mxu0 0.0
    %360 = vmatpush1.xpose.msra.mxu0 0.0
    %361 = vmatprep.subr.mxu0 0.0
    %362 = vmatpush1.xpose.msra.mxu0 0.0
    %363 = vmatprep.subr.mxu0 0.0
    %364 = vmatpush1.xpose.msra.mxu0 0.0
    %365 = vmatprep.subr.mxu0 0.0
    %366 = vmatpush1.xpose.msra.mxu0 0.0
    %367 = vmatprep.subr.mxu0 0.0
    %368 = vmatpush1.xpose.msra.mxu0 0.0
    %369 = vmatprep.subr.mxu0 0.0
    %370 = vmatpush1.xpose.msra.mxu0 0.0
    %371 = vmatprep.subr.mxu0 0.0
    %372 = vmatpush1.xpose.msra.mxu0 0.0
    %373 = vmatprep.subr.mxu0 0.0
    %374 = vmatpush1.xpose.msra.mxu0 0.0
    %375 = vmatprep.subr.mxu0 0.0
    %376 = vmatpush1.xpose.msra.mxu0 0.0
    %377 = vmatprep.subr.mxu0 0.0
    %378 = vmatpush1.xpose.msra.mxu0 0.0
    %379 = vmatprep.subr.mxu0 0.0
    %380 = vmatpush1.xpose.msra.mxu0 0.0
    %381 = vmatprep.subr.mxu0 0.0
    %382 = vmatpush1.xpose.msra.mxu0 0.0
    %383 = vmatprep.subr.mxu0 0.0
    %384 = vmatpush1.xpose.msra.mxu0 0.0
    %385 = vmatprep.subr.mxu0 0.0
    %386 = vmatpush1.xpose.msra.mxu0 0.0
    %387 = vmatprep.subr.mxu0 0.0
    %388 = vmatpush1.xpose.msra.mxu0 0.0
    %389 = vmatprep.mubr.f32.mxu0 0.0
    %390 = vmatmul.mubr.f32.gmra.mrb[0].mxu0 %v196
    %v391 = vpop.f32.mrb[0].mxu0
    %v392 = vadd.f32 0.0, %v391
    %v393 = vpop.f32.mrb[0].mxu0
    %394 = vdwg.mxu0
    %395 = vmatprep.subr.mxu0 0.0
    %396 = vmatpush1.xpose.msra.mxu0 %v321
    %397 = vmatprep.subr.mxu0 0.0
    %398 = vmatpush1.xpose.msra.mxu0 0.0
    %399 = vmatprep.subr.mxu0 0.0
    %400 = vmatpush1.xpose.msra.mxu0 0.0
    %401 = vmatprep.subr.mxu0 0.0
    %402 = vmatpush1.xpose.msra.mxu0 0.0
    %403 = vmatprep.subr.mxu0 0.0
    %404 = vmatpush1.xpose.msra.mxu0 0.0
    %405 = vmatprep.subr.mxu0 0.0
    %406 = vmatpush1.xpose.msra.mxu0 0.0
    %407 = vmatprep.subr.mxu0 0.0
    %408 = vmatpush1.xpose.msra.mxu0 0.0
    %409 = vmatprep.subr.mxu0 0.0
    %410 = vmatpush1.xpose.msra.mxu0 0.0
    %411 = vmatprep.subr.mxu0 0.0
    %412 = vmatpush1.xpose.msra.mxu0 0.0
    %413 = vmatprep.subr.mxu0 0.0
    %414 = vmatpush1.xpose.msra.mxu0 0.0
    %415 = vmatprep.subr.mxu0 0.0
    %416 = vmatpush1.xpose.msra.mxu0 0.0
    %417 = vmatprep.subr.mxu0 0.0
    %418 = vmatpush1.xpose.msra.mxu0 0.0
    %419 = vmatprep.subr.mxu0 0.0
    %420 = vmatpush1.xpose.msra.mxu0 0.0
    %421 = vmatprep.subr.mxu0 0.0
    %422 = vmatpush1.xpose.msra.mxu0 0.0
    %423 = vmatprep.subr.mxu0 0.0
    %424 = vmatpush1.xpose.msra.mxu0 0.0
    %425 = vmatprep.subr.mxu0 0.0
    %426 = vmatpush1.xpose.msra.mxu0 0.0
    %427 = vmatprep.subr.mxu0 0.0
    %428 = vmatpush1.xpose.msra.mxu0 0.0
    %429 = vmatprep.subr.mxu0 0.0
    %430 = vmatpush1.xpose.msra.mxu0 0.0
    %431 = vmatprep.subr.mxu0 0.0
    %432 = vmatpush1.xpose.msra.mxu0 0.0
    %433 = vmatprep.subr.mxu0 0.0
    %434 = vmatpush1.xpose.msra.mxu0 0.0
    %435 = vmatprep.subr.mxu0 0.0
    %436 = vmatpush1.xpose.msra.mxu0 0.0
    %437 = vmatprep.subr.mxu0 0.0
    %438 = vmatpush1.xpose.msra.mxu0 0.0
    %439 = vmatprep.subr.mxu0 0.0
    %440 = vmatpush1.xpose.msra.mxu0 0.0
    %441 = vmatprep.subr.mxu0 0.0
    %442 = vmatpush1.xpose.msra.mxu0 0.0
    %443 = vmatprep.subr.mxu0 0.0
    %444 = vmatpush1.xpose.msra.mxu0 0.0
    %445 = vmatprep.subr.mxu0 0.0
    %446 = vmatpush1.xpose.msra.mxu0 0.0
    %447 = vmatprep.subr.mxu0 0.0
    %448 = vmatpush1.xpose.msra.mxu0 0.0
    %449 = vmatprep.subr.mxu0 0.0
    %450 = vmatpush1.xpose.msra.mxu0 0.0
    %451 = vmatprep.subr.mxu0 0.0
    %452 = vmatpush1.xpose.msra.mxu0 0.0
    %453 = vmatprep.subr.mxu0 0.0
    %454 = vmatpush1.xpose.msra.mxu0 0.0
    %455 = vmatprep.subr.mxu0 0.0
    %456 = vmatpush1.xpose.msra.mxu0 0.0
    %457 = vmatprep.subr.mxu0 0.0
    %458 = vmatpush1.xpose.msra.mxu0 0.0
    %459 = vmatprep.mubr.f32.mxu0 0.0
    %460 = vmatmul.mubr.f32.gmra.mrb[0].mxu0 %v201
    %v461 = vpop.f32.mrb[0].mxu0
    %v462 = vadd.f32 0.0, %v461
    %v463 = vpop.f32.mrb[0].mxu0
    %464 = vdwg.mxu0
    %vm465 = vcmask 64512
    %v466 = vsel %vm465, %v392, -inf
    %467 = vmax.xlane.f32.xlu0 %v466
    %v468 = vpop.xlane.xlu0 %467
    %v469 = vsel %vm465, %v462, -inf
    %470 = vmax.xlane.f32.xlu0 %v469
    %v471 = vpop.xlane.xlu0 %470
    %v472 = vsub.f32 %v392, %v468
    %v473 = vsub.f32 %v462, %v471
    %v474 = vmul.f32 %v472, 1.442695
    %v475 = vpow.pop %v474
    %v476 = vmul.f32 %v473, 1.442695
    %v477 = vpow.pop %v476
    %v478 = vsel %vm465, %v475, 0.0
    %479 = vadd.xlane.f32.xlu0 %v478
    %v480 = vpop.xlane.xlu0 %479
    %v481 = vsel %vm465, %v477, 0.0
    %482 = vadd.xlane.f32.xlu0 %v481
    %v483 = vpop.xlane.xlu0 %482
    %v484 = vrcp.pop %v480
    %v485 = vrcp.pop %v483
    %v486 = vmul.f32 %v480, %v484
    %v487 = vmul.f32 %v483, %v485
    %v488 = vsub.f32 2.0, %v486
    %v489 = vsub.f32 2.0, %v487
    %v490 = vmul.f32 %v484, %v488
    %v491 = vmul.f32 %v485, %v489
    %v493 = vsel %vm465, %v475, 0
    %495 = vmatprep.subr.mxu0 0.0
    %496 = vmatpush1.msra.mxu0 %v317
    %497 = vmatprep.subr.mxu0 0.0
    %498 = vmatpush1.msra.mxu0 0.0
    %499 = vmatprep.subr.mxu0 0.0
    %500 = vmatpush1.msra.mxu0 0.0
    %501 = vmatprep.subr.mxu0 0.0
    %502 = vmatpush1.msra.mxu0 0.0
    %503 = vmatprep.subr.mxu0 0.0
    %504 = vmatpush1.msra.mxu0 0.0
    %505 = vmatprep.subr.mxu0 0.0
    %506 = vmatpush1.msra.mxu0 0.0
    %507 = vmatprep.subr.mxu0 0.0
    %508 = vmatpush1.msra.mxu0 0.0
    %509 = vmatprep.subr.mxu0 0.0
    %510 = vmatpush1.msra.mxu0 0.0
    %511 = vmatprep.subr.mxu0 0.0
    %512 = vmatpush1.msra.mxu0 0.0
    %513 = vmatprep.subr.mxu0 0.0
    %514 = vmatpush1.msra.mxu0 0.0
    %515 = vmatprep.subr.mxu0 0.0
    %516 = vmatpush1.msra.mxu0 0.0
    %517 = vmatprep.subr.mxu0 0.0
    %518 = vmatpush1.msra.mxu0 0.0
    %519 = vmatprep.subr.mxu0 0.0
    %520 = vmatpush1.msra.mxu0 0.0
    %521 = vmatprep.subr.mxu0 0.0
    %522 = vmatpush1.msra.mxu0 0.0
    %523 = vmatprep.subr.mxu0 0.0
    %524 = vmatpush1.msra.mxu0 0.0
    %525 = vmatprep.subr.mxu0 0.0
    %526 = vmatpush1.msra.mxu0 0.0
    %527 = vmatprep.subr.mxu0 0.0
    %528 = vmatpush1.msra.mxu0 0.0
    %529 = vmatprep.subr.mxu0 0.0
    %530 = vmatpush1.msra.mxu0 0.0
    %531 = vmatprep.subr.mxu0 0.0
    %532 = vmatpush1.msra.mxu0 0.0
    %533 = vmatprep.subr.mxu0 0.0
    %534 = vmatpush1.msra.mxu0 0.0
    %535 = vmatprep.subr.mxu0 0.0
    %536 = vmatpush1.msra.mxu0 0.0
    %537 = vmatprep.subr.mxu0 0.0
    %538 = vmatpush1.msra.mxu0 0.0
    %539 = vmatprep.subr.mxu0 0.0
    %540 = vmatpush1.msra.mxu0 0.0
    %541 = vmatprep.subr.mxu0 0.0
    %542 = vmatpush1.msra.mxu0 0.0
    %543 = vmatprep.subr.mxu0 0.0
    %544 = vmatpush1.msra.mxu0 0.0
    %545 = vmatprep.subr.mxu0 0.0
    %546 = vmatpush1.msra.mxu0 0.0
    %547 = vmatprep.subr.mxu0 0.0
    %548 = vmatpush1.msra.mxu0 0.0
    %549 = vmatprep.subr.mxu0 0.0
    %550 = vmatpush1.msra.mxu0 0.0
    %551 = vmatprep.subr.mxu0 0.0
    %552 = vmatpush1.msra.mxu0 0.0
    %553 = vmatprep.subr.mxu0 0.0
    %554 = vmatpush1.msra.mxu0 0.0
    %555 = vmatprep.subr.mxu0 0.0
    %556 = vmatpush1.msra.mxu0 0.0
    %557 = vmatprep.subr.mxu0 0.0
    %558 = vmatpush1.msra.mxu0 0.0
    %559 = vmatprep.mubr.f32.mxu0 0.0
    %560 = vmatmul.mubr.f32.gmra.mrb[0].mxu0 %v493
    %v561 = vpop.f32.mrb[0].mxu0
    %v562 = vadd.f32 0.0, %v561
    %v563 = vpop.f32.mrb[0].mxu0
    %564 = vdwg.mxu0
    %v566 = vsel %vm465, %v477, 0
    %568 = vmatprep.subr.mxu0 0.0
    %569 = vmatpush1.msra.mxu0 %v323
    %570 = vmatprep.subr.mxu0 0.0
    %571 = vmatpush1.msra.mxu0 0.0
    %572 = vmatprep.subr.mxu0 0.0
    %573 = vmatpush1.msra.mxu0 0.0
    %574 = vmatprep.subr.mxu0 0.0
    %575 = vmatpush1.msra.mxu0 0.0
    %576 = vmatprep.subr.mxu0 0.0
    %577 = vmatpush1.msra.mxu0 0.0
    %578 = vmatprep.subr.mxu0 0.0
    %579 = vmatpush1.msra.mxu0 0.0
    %580 = vmatprep.subr.mxu0 0.0
    %581 = vmatpush1.msra.mxu0 0.0
    %582 = vmatprep.subr.mxu0 0.0
    %583 = vmatpush1.msra.mxu0 0.0
    %584 = vmatprep.subr.mxu0 0.0
    %585 = vmatpush1.msra.mxu0 0.0
    %586 = vmatprep.subr.mxu0 0.0
    %587 = vmatpush1.msra.mxu0 0.0
    %588 = vmatprep.subr.mxu0 0.0
    %589 = vmatpush1.msra.mxu0 0.0
    %590 = vmatprep.subr.mxu0 0.0
    %591 = vmatpush1.msra.mxu0 0.0
    %592 = vmatprep.subr.mxu0 0.0
    %593 = vmatpush1.msra.mxu0 0.0
    %594 = vmatprep.subr.mxu0 0.0
    %595 = vmatpush1.msra.mxu0 0.0
    %596 = vmatprep.subr.mxu0 0.0
    %597 = vmatpush1.msra.mxu0 0.0
    %598 = vmatprep.subr.mxu0 0.0
    %599 = vmatpush1.msra.mxu0 0.0
    %600 = vmatprep.subr.mxu0 0.0
    %601 = vmatpush1.msra.mxu0 0.0
    %602 = vmatprep.subr.mxu0 0.0
    %603 = vmatpush1.msra.mxu0 0.0
    %604 = vmatprep.subr.mxu0 0.0
    %605 = vmatpush1.msra.mxu0 0.0
    %606 = vmatprep.subr.mxu0 0.0
    %607 = vmatpush1.msra.mxu0 0.0
    %608 = vmatprep.subr.mxu0 0.0
    %609 = vmatpush1.msra.mxu0 0.0
    %610 = vmatprep.subr.mxu0 0.0
    %611 = vmatpush1.msra.mxu0 0.0
    %612 = vmatprep.subr.mxu0 0.0
    %613 = vmatpush1.msra.mxu0 0.0
    %614 = vmatprep.subr.mxu0 0.0
    %615 = vmatpush1.msra.mxu0 0.0
    %616 = vmatprep.subr.mxu0 0.0
    %617 = vmatpush1.msra.mxu0 0.0
    %618 = vmatprep.subr.mxu0 0.0
    %619 = vmatpush1.msra.mxu0 0.0
    %620 = vmatprep.subr.mxu0 0.0
    %621 = vmatpush1.msra.mxu0 0.0
    %622 = vmatprep.subr.mxu0 0.0
    %623 = vmatpush1.msra.mxu0 0.0
    %624 = vmatprep.subr.mxu0 0.0
    %625 = vmatpush1.msra.mxu0 0.0
    %626 = vmatprep.subr.mxu0 0.0
    %627 = vmatpush1.msra.mxu0 0.0
    %628 = vmatprep.subr.mxu0 0.0
    %629 = vmatpush1.msra.mxu0 0.0
    %630 = vmatprep.subr.mxu0 0.0
    %631 = vmatpush1.msra.mxu0 0.0
    %632 = vmatprep.mubr.f32.mxu0 0.0
    %633 = vmatmul.mubr.f32.gmra.mrb[0].mxu0 %v566
    %v634 = vpop.f32.mrb[0].mxu0
    %v635 = vadd.f32 0.0, %v634
    %v636 = vpop.f32.mrb[0].mxu0
    %637 = vdwg.mxu0
    %v638 = vmul.f32 %v562, %v490
    %v639 = vmul.f32 %v635, %v491
    %v640 = vadd.f32 %v102, %v638
    %v641 = vadd.f32 %v103, %v639
    %642 = vst [vmem:[#allocation13] sm:$0xff] %v640
    %643 = vst [vmem:[#allocation13 + $0x8] sm:$0xff] %v641
    // Predicated region
    $region50: #{tpu_custom_call.1} parent=1 // pred_check
      _
    $region51: #{tpu_custom_call.1} parent=1 // pred_check_branch
      %645 = sbr.rel (0) target = $region53
    $region52: #{tpu_custom_call.1} parent=1 // pred_region
      %s647 = ssub.s32 256, 256
      %648 = vsyncadd [#allocation4], %s647
      %s649 = sshll.u32 [#allocation13], 4
      %s650 = int_to_ptr.vmem [resolvable:$true] %s649
      %655 = dma.vmem_to_hbm [thread:$0]  %s650, 256, %s6, [#allocation4], 128, 128, 8
    $region53: #{tpu_custom_call.1} parent=1 // pred_fallthru
      _
    // Predicated region
    $region54: #{tpu_custom_call.1} parent=1 // pred_check
      _
    $region55: #{tpu_custom_call.1} parent=1 // pred_check_branch
      %657 = sbr.rel (0) target = $region57
    $region56: #{tpu_custom_call.1} parent=1 // pred_region
      %658 = dma.done [#allocation4], 256
    $region57: #{tpu_custom_call.1} parent=1 // pred_fallthru
      _
    %659 = vsyncpa [#allocation3], 1
    %660 = vsyncpa [#allocation6], 1
    %661 = vsyncpa [#allocation9], 1
    %662 = vsyncpa [#allocation12], 1
    %663 = vsyncpa [#allocation4], 1

// kernel: tpu_custom_call.1
$region0: #{tpu_custom_call.1}
  #allocation0 [shape = 'u32[]', space=smem, size = 0x4, offset = 0x4, fixed_abs, tag = 'smem constant byte address 0x4 - core index']
  #allocation1 [shape = 'u32[144,128]{1,0:T(1,128)}', space=vmem, size = 0x12000, scoped, tag = 'internal scratch']
  %s0 = inlined_call_operand.hbm [shape: f32[2,8,128], index: 0, kind: input, shape index: {}]
  %s1 = inlined_call_operand.hbm [shape: f32[2,8,128], index: 1, kind: input, shape index: {}]
  %s2 = inlined_call_operand.hbm [shape: f32[128,128], index: 2, kind: input, shape index: {}]
  %s3 = inlined_call_operand.hbm [shape: f32[1,128], index: 3, kind: input, shape index: {}]
  %s4 = inlined_call_operand.hbm [shape: f32[128,256], index: 4, kind: input, shape index: {}]
  %s5 = inlined_call_operand.hbm [shape: f32[1,256], index: 5, kind: input, shape index: {}]
  %s6 = inlined_call_operand.hbm [shape: f32[2,8,128], index: 6, kind: output, shape index: {}]
  %s7 = sld [smem:[#allocation0]]
  $region58: #{tpu_custom_call.1} parent=0
    _
  %s9 = ssub.s32 1, %s7
  %s10 = scalar_select 0, %s9, %s7
  $region1: #{tpu_custom_call.1} parent=0
    #allocation2 [shape = 'u8[8192]{0}', space=vmem, size = 0x2000, scoped, tag = 'input window, operand 0, single buffered']
    #allocation3 [shape = 's32[1]{0}', space=sflag, size = 0x4, scoped, tag = 'scoped memory for tpu_custom_call.1']
    #allocation4 [shape = 's32[1]{0}', space=sflag, size = 0x4, scoped, tag = 'scoped memory for tpu_custom_call.1']
    #allocation5 [shape = 'u8[8192]{0}', space=vmem, size = 0x2000, scoped, tag = 'input window, operand 1, single buffered']
    #allocation6 [shape = 's32[1]{0}', space=sflag, size = 0x4, scoped, tag = 'scoped memory for tpu_custom_call.1']
    #allocation7 [shape = 'u8[65536]{0}', space=vmem, size = 0x10000, scoped, tag = 'input window, operand 2, single buffered']
    #allocation8 [shape = 'u8[512]{0}', space=vmem, size = 0x400, scoped, tag = 'input window, operand 3, single buffered']
    #allocation9 [shape = 's32[1]{0}', space=sflag, size = 0x4, scoped, tag = 'scoped memory for tpu_custom_call.1']
    #allocation10 [shape = 'u8[131072]{0}', space=vmem, size = 0x20000, scoped, tag = 'input window, operand 4, single buffered']
    #allocation11 [shape = 'u8[1024]{0}', space=vmem, size = 0x400, scoped, tag = 'input window, operand 5, single buffered']
    #allocation12 [shape = 's32[1]{0}', space=sflag, size = 0x4, scoped, tag = 'scoped memory for tpu_custom_call.1']
    #allocation13 [shape = 'u8[8192]{0}', space=vmem, size = 0x2000, scoped, tag = 'output window, operand 0, single buffered']
    %11 = vsyncpa [#allocation3], 0
    %12 = vsyncpa [#allocation6], 0
    %13 = vsyncpa [#allocation9], 0
    %14 = vsyncpa [#allocation12], 0
    %15 = vsyncpa [#allocation4], 0
    // Predicated region
    $region2: #{tpu_custom_call.1} parent=1 // pred_check
      _
    $region3: #{tpu_custom_call.1} parent=1 // pred_check_branch
      %17 = sbr.rel (0) target = $region5
    $region4: #{tpu_custom_call.1} parent=1 // pred_region
      %s19 = ssub.s32 256, 256
      %20 = vsyncadd [#allocation3], %s19
      %s21 = sshll.u32 [#allocation2], 4
      %s22 = int_to_ptr.vmem [resolvable:$true] %s21
      %27 = dma.hbm_to_vmem [thread:$0]  %s0, 256, %s22, [#allocation3], 128, 128, 8
    $region5: #{tpu_custom_call.1} parent=1 // pred_fallthru
      _
    // Predicated region
    $region6: #{tpu_custom_call.1} parent=1 // pred_check
      _
    $region7: #{tpu_custom_call.1} parent=1 // pred_check_branch
      %29 = sbr.rel (0) target = $region9
    $region8: #{tpu_custom_call.1} parent=1 // pred_region
      %s31 = ssub.s32 256, 256
      %32 = vsyncadd [#allocation6], %s31
      %s33 = sshll.u32 [#allocation5], 4
      %s34 = int_to_ptr.vmem [resolvable:$true] %s33
      %39 = dma.hbm_to_vmem [thread:$0]  %s1, 256, %s34, [#allocation6], 128, 128, 8
    $region9: #{tpu_custom_call.1} parent=1 // pred_fallthru
      _
    // Predicated region
    $region10: #{tpu_custom_call.1} parent=1 // pred_check
      _
    $region11: #{tpu_custom_call.1} parent=1 // pred_check_branch
      %41 = sbr.rel (0) target = $region13
    $region12: #{tpu_custom_call.1} parent=1 // pred_region
      %s43 = ssub.s32 2048, 2048
      %44 = vsyncadd [#allocation6], %s43
      %s45 = sshll.u32 [#allocation7], 4
      %s46 = int_to_ptr.vmem [resolvable:$true] %s45
      %51 = dma.hbm_to_vmem [thread:$0]  %s2, 2048, %s46, [#allocation6], 128, 128, 8
    $region13: #{tpu_custom_call.1} parent=1 // pred_fallthru
      _
    // Predicated region
    $region14: #{tpu_custom_call.1} parent=1 // pred_check
      _
    $region15: #{tpu_custom_call.1} parent=1 // pred_check_branch
      %53 = sbr.rel (0) target = $region17
    $region16: #{tpu_custom_call.1} parent=1 // pred_region
      %s55 = ssub.s32 16, 16
      %56 = vsyncadd [#allocation9], %s55
      %s58 = sshll.u32 [#allocation8], 4
      %s59 = int_to_ptr.vmem [resolvable:$true] %s58
      %61 = dma.hbm_to_vmem [thread:$0]  %s3, 16, %s59, [#allocation9]
    $region17: #{tpu_custom_call.1} parent=1 // pred_fallthru
      _
    // Predicated region
    $region18: #{tpu_custom_call.1} parent=1 // pred_check
      _
    $region19: #{tpu_custom_call.1} parent=1 // pred_check_branch
      %63 = sbr.rel (0) target = $region21
    $region20: #{tpu_custom_call.1} parent=1 // pred_region
      %s65 = ssub.s32 4096, 4096
      %66 = vsyncadd [#allocation9], %s65
      %s67 = sshll.u32 [#allocation10], 4
      %s68 = int_to_ptr.vmem [resolvable:$true] %s67
      %73 = dma.hbm_to_vmem [thread:$0]  %s4, 4096, %s68, [#allocation9], 256, 256, 16
    $region21: #{tpu_custom_call.1} parent=1 // pred_fallthru
      _
    // Predicated region
    $region22: #{tpu_custom_call.1} parent=1 // pred_check
      _
    $region23: #{tpu_custom_call.1} parent=1 // pred_check_branch
      %75 = sbr.rel (0) target = $region25
    $region24: #{tpu_custom_call.1} parent=1 // pred_region
      %s77 = ssub.s32 32, 32
      %78 = vsyncadd [#allocation12], %s77
      %s80 = sshll.u32 [#allocation11], 4
      %s81 = int_to_ptr.vmem [resolvable:$true] %s80
      %83 = dma.hbm_to_vmem [thread:$0]  %s5, 32, %s81, [#allocation12]
    $region25: #{tpu_custom_call.1} parent=1 // pred_fallthru
      _
    // Predicated region
    $region26: #{tpu_custom_call.1} parent=1 // pred_check
      _
    $region27: #{tpu_custom_call.1} parent=1 // pred_check_branch
      %85 = sbr.rel (0) target = $region29
    $region28: #{tpu_custom_call.1} parent=1 // pred_region
      %86 = dma.done [#allocation3], 256
    $region29: #{tpu_custom_call.1} parent=1 // pred_fallthru
      _
    // Predicated region
    $region30: #{tpu_custom_call.1} parent=1 // pred_check
      _
    $region31: #{tpu_custom_call.1} parent=1 // pred_check_branch
      %88 = sbr.rel (0) target = $region33
    $region32: #{tpu_custom_call.1} parent=1 // pred_region
      %89 = dma.done [#allocation6], 256
    $region33: #{tpu_custom_call.1} parent=1 // pred_fallthru
      _
    // Predicated region
    $region34: #{tpu_custom_call.1} parent=1 // pred_check
      _
    $region35: #{tpu_custom_call.1} parent=1 // pred_check_branch
      %91 = sbr.rel (0) target = $region37
    $region36: #{tpu_custom_call.1} parent=1 // pred_region
      %92 = dma.done [#allocation6], 2048
    $region37: #{tpu_custom_call.1} parent=1 // pred_fallthru
      _
    // Predicated region
    $region38: #{tpu_custom_call.1} parent=1 // pred_check
      _
    $region39: #{tpu_custom_call.1} parent=1 // pred_check_branch
      %94 = sbr.rel (0) target = $region41
    $region40: #{tpu_custom_call.1} parent=1 // pred_region
      %95 = dma.done [#allocation9], 16
    $region41: #{tpu_custom_call.1} parent=1 // pred_fallthru
      _
    // Predicated region
    $region42: #{tpu_custom_call.1} parent=1 // pred_check
      _
    $region43: #{tpu_custom_call.1} parent=1 // pred_check_branch
      %97 = sbr.rel (0) target = $region45
    $region44: #{tpu_custom_call.1} parent=1 // pred_region
      %98 = dma.done [#allocation9], 4096
    $region45: #{tpu_custom_call.1} parent=1 // pred_fallthru
      _
    // Predicated region
    $region46: #{tpu_custom_call.1} parent=1 // pred_check
      _
    $region47: #{tpu_custom_call.1} parent=1 // pred_check_branch
      %100 = sbr.rel (0) target = $region49
    $region48: #{tpu_custom_call.1} parent=1 // pred_region
      %101 = dma.done [#allocation12], 32
    $region49: #{tpu_custom_call.1} parent=1 // pred_fallthru
      _
    %v102 = vld [vmem:[#allocation2] sm:$0xff]
    %v103 = vld [vmem:[#allocation2 + $0x8] sm:$0xff]
    %v104 = vld [vmem:[#allocation5] sm:$0xff]
    %v105 = vld [vmem:[#allocation5 + $0x8] sm:$0xff]
    %v106 = vld [vmem:[#allocation7] sm:$0xff]
    %v107 = vld [vmem:[#allocation7 + $0x8] sm:$0xff]
    %v108 = vld [vmem:[#allocation7 + $0x10] sm:$0xff]
    %v109 = vld [vmem:[#allocation7 + $0x18] sm:$0xff]
    %v110 = vld [vmem:[#allocation7 + $0x20] sm:$0xff]
    %v111 = vld [vmem:[#allocation7 + $0x28] sm:$0xff]
    %v112 = vld [vmem:[#allocation7 + $0x30] sm:$0xff]
    %v113 = vld [vmem:[#allocation7 + $0x38] sm:$0xff]
    %v114 = vld [vmem:[#allocation7 + $0x40] sm:$0xff]
    %v115 = vld [vmem:[#allocation7 + $0x48] sm:$0xff]
    %v116 = vld [vmem:[#allocation7 + $0x50] sm:$0xff]
    %v117 = vld [vmem:[#allocation7 + $0x58] sm:$0xff]
    %v118 = vld [vmem:[#allocation7 + $0x60] sm:$0xff]
    %v119 = vld [vmem:[#allocation7 + $0x68] sm:$0xff]
    %v120 = vld [vmem:[#allocation7 + $0x70] sm:$0xff]
    %v121 = vld [vmem:[#allocation7 + $0x78] sm:$0xff]
    %v122 = vld [vmem:[#allocation8] sm:$0x1]
    %v124 = vlaneseq
    %v125 = vshrl.u32 %v124, 7
    %v126 = vsub.s32 0, %v125
    %v127 = vrot.slane %v122, %v126
    %129 = vmatprep.subr.mxu0 0.0
    %130 = vmatpush1.msra.mxu0 %v106
    %131 = vmatprep.subr.mxu0 0.0
    %132 = vmatpush1.msra.mxu0 %v107
    %133 = vmatprep.subr.mxu0 0.0
    %134 = vmatpush1.msra.mxu0 %v108
    %135 = vmatprep.subr.mxu0 0.0
    %136 = vmatpush1.msra.mxu0 %v109
    %137 = vmatprep.subr.mxu0 0.0
    %138 = vmatpush1.msra.mxu0 %v110
    %139 = vmatprep.subr.mxu0 0.0
    %140 = vmatpush1.msra.mxu0 %v111
    %141 = vmatprep.subr.mxu0 0.0
    %142 = vmatpush1.msra.mxu0 %v112
    %143 = vmatprep.subr.mxu0 0.0
    %144 = vmatpush1.msra.mxu0 %v113
    %145 = vmatprep.subr.mxu0 0.0
    %146 = vmatpush1.msra.mxu0 %v114
    %147 = vmatprep.subr.mxu0 0.0
    %148 = vmatpush1.msra.mxu0 %v115
    %149 = vmatprep.subr.mxu0 0.0
    %150 = vmatpush1.msra.mxu0 %v116
    %151 = vmatprep.subr.mxu0 0.0
    %152 = vmatpush1.msra.mxu0 %v117
    %153 = vmatprep.subr.mxu0 0.0
    %154 = vmatpush1.msra.mxu0 %v118
    %155 = vmatprep.subr.mxu0 0.0
    %156 = vmatpush1.msra.mxu0 %v119
    %157 = vmatprep.subr.mxu0 0.0
    %158 = vmatpush1.msra.mxu0 %v120
    %159 = vmatprep.subr.mxu0 0.0
    %160 = vmatpush1.msra.mxu0 %v121
    %161 = vmatprep.subr.mxu0 0.0
    %162 = vmatpush1.msra.mxu0 0.0
    %163 = vmatprep.subr.mxu0 0.0
    %164 = vmatpush1.msra.mxu0 0.0
    %165 = vmatprep.subr.mxu0 0.0
    %166 = vmatpush1.msra.mxu0 0.0
    %167 = vmatprep.subr.mxu0 0.0
    %168 = vmatpush1.msra.mxu0 0.0
    %169 = vmatprep.subr.mxu0 0.0
    %170 = vmatpush1.msra.mxu0 0.0
    %171 = vmatprep.subr.mxu0 0.0
    %172 = vmatpush1.msra.mxu0 0.0
    %173 = vmatprep.subr.mxu0 0.0
    %174 = vmatpush1.msra.mxu0 0.0
    %175 = vmatprep.subr.mxu0 0.0
    %176 = vmatpush1.msra.mxu0 0.0
    %177 = vmatprep.subr.mxu0 0.0
    %178 = vmatpush1.msra.mxu0 0.0
    %179 = vmatprep.subr.mxu0 0.0
    %180 = vmatpush1.msra.mxu0 0.0
    %181 = vmatprep.subr.mxu0 0.0
    %182 = vmatpush1.msra.mxu0 0.0
    %183 = vmatprep.subr.mxu0 0.0
    %184 = vmatpush1.msra.mxu0 0.0
    %185 = vmatprep.subr.mxu0 0.0
    %186 = vmatpush1.msra.mxu0 0.0
    %187 = vmatprep.subr.mxu0 0.0
    %188 = vmatpush1.msra.mxu0 0.0
    %189 = vmatprep.subr.mxu0 0.0
    %190 = vmatpush1.msra.mxu0 0.0
    %191 = vmatprep.subr.mxu0 0.0
    %192 = vmatpush1.msra.mxu0 0.0
    %193 = vmatprep.mubr.f32.mxu0 0.0
    %194 = vmatmul.mubr.f32.gmra.mrb[0].mxu0 %v102
    %v195 = vpop.f32.mrb[0].mxu0
    %v196 = vadd.f32 %v127, %v195
    %v197 = vpop.f32.mrb[0].mxu0
    %198 = vmatprep.mubr.f32.mxu0 0.0
    %199 = vmatmul.mubr.f32.gmra.mrb[0].mxu0 %v103
    %v200 = vpop.f32.mrb[0].mxu0
    %v201 = vadd.f32 %v127, %v200
    %v202 = vpop.f32.mrb[0].mxu0
    %203 = vdwg.mxu0
    %v204 = vld [vmem:[#allocation10] sm:$0xff]
    %v205 = vld [vmem:[#allocation10 + $0x8] sm:$0xff]
    %v206 = vld [vmem:[#allocation10 + $0x10] sm:$0xff]
    %v207 = vld [vmem:[#allocation10 + $0x18] sm:$0xff]
    %v208 = vld [vmem:[#allocation10 + $0x20] sm:$0xff]
    %v209 = vld [vmem:[#allocation10 + $0x28] sm:$0xff]
    %v210 = vld [vmem:[#allocation10 + $0x30] sm:$0xff]
    %v211 = vld [vmem:[#allocation10 + $0x38] sm:$0xff]
    %v212 = vld [vmem:[#allocation10 + $0x40] sm:$0xff]
    %v213 = vld [vmem:[#allocation10 + $0x48] sm:$0xff]
    %v214 = vld [vmem:[#allocation10 + $0x50] sm:$0xff]
    %v215 = vld [vmem:[#allocation10 + $0x58] sm:$0xff]
    %v216 = vld [vmem:[#allocation10 + $0x60] sm:$0xff]
    %v217 = vld [vmem:[#allocation10 + $0x68] sm:$0xff]
    %v218 = vld [vmem:[#allocation10 + $0x70] sm:$0xff]
    %v219 = vld [vmem:[#allocation10 + $0x78] sm:$0xff]
    %v220 = vld [vmem:[#allocation10 + $0x80] sm:$0xff]
    %v221 = vld [vmem:[#allocation10 + $0x88] sm:$0xff]
    %v222 = vld [vmem:[#allocation10 + $0x90] sm:$0xff]
    %v223 = vld [vmem:[#allocation10 + $0x98] sm:$0xff]
    %v224 = vld [vmem:[#allocation10 + $0xa0] sm:$0xff]
    %v225 = vld [vmem:[#allocation10 + $0xa8] sm:$0xff]
    %v226 = vld [vmem:[#allocation10 + $0xb0] sm:$0xff]
    %v227 = vld [vmem:[#allocation10 + $0xb8] sm:$0xff]
    %v228 = vld [vmem:[#allocation10 + $0xc0] sm:$0xff]
    %v229 = vld [vmem:[#allocation10 + $0xc8] sm:$0xff]
    %v230 = vld [vmem:[#allocation10 + $0xd0] sm:$0xff]
    %v231 = vld [vmem:[#allocation10 + $0xd8] sm:$0xff]
    %v232 = vld [vmem:[#allocation10 + $0xe0] sm:$0xff]
    %v233 = vld [vmem:[#allocation10 + $0xe8] sm:$0xff]
    %v234 = vld [vmem:[#allocation10 + $0xf0] sm:$0xff]
    %v235 = vld [vmem:[#allocation10 + $0xf8] sm:$0xff]
    %v236 = vld [vmem:[#allocation11] sm:$0x3]
    %v238 = vlaneseq
    %v239 = vshrl.u32 %v238, 7
    %v240 = vsub.s32 0, %v239
    %v241 = vrot.slane %v236, %v240
    %v242 = vlaneseq
    %v243 = vshrl.u32 %v242, 7
    %v244 = vsub.s32 1, %v243
    %v245 = vrot.slane %v236, %v244
    %248 = vmatprep.subr.mxu0 %v205
    %249 = vmatpush1.msra.mxu0 %v204
    %250 = vmatprep.subr.mxu0 %v207
    %251 = vmatpush1.msra.mxu0 %v206
    %252 = vmatprep.subr.mxu0 %v209
    %253 = vmatpush1.msra.mxu0 %v208
    %254 = vmatprep.subr.mxu0 %v211
    %255 = vmatpush1.msra.mxu0 %v210
    %256 = vmatprep.subr.mxu0 %v213
    %257 = vmatpush1.msra.mxu0 %v212
    %258 = vmatprep.subr.mxu0 %v215
    %259 = vmatpush1.msra.mxu0 %v214
    %260 = vmatprep.subr.mxu0 %v217
    %261 = vmatpush1.msra.mxu0 %v216
    %262 = vmatprep.subr.mxu0 %v219
    %263 = vmatpush1.msra.mxu0 %v218
    %264 = vmatprep.subr.mxu0 %v221
    %265 = vmatpush1.msra.mxu0 %v220
    %266 = vmatprep.subr.mxu0 %v223
    %267 = vmatpush1.msra.mxu0 %v222
    %268 = vmatprep.subr.mxu0 %v225
    %269 = vmatpush1.msra.mxu0 %v224
    %270 = vmatprep.subr.mxu0 %v227
    %271 = vmatpush1.msra.mxu0 %v226
    %272 = vmatprep.subr.mxu0 %v229
    %273 = vmatpush1.msra.mxu0 %v228
    %274 = vmatprep.subr.mxu0 %v231
    %275 = vmatpush1.msra.mxu0 %v230
    %276 = vmatprep.subr.mxu0 %v233
    %277 = vmatpush1.msra.mxu0 %v232
    %278 = vmatprep.subr.mxu0 %v235
    %279 = vmatpush1.msra.mxu0 %v234
    %280 = vmatprep.subr.mxu0 0.0
    %281 = vmatpush1.msra.mxu0 0.0
    %282 = vmatprep.subr.mxu0 0.0
    %283 = vmatpush1.msra.mxu0 0.0
    %284 = vmatprep.subr.mxu0 0.0
    %285 = vmatpush1.msra.mxu0 0.0
    %286 = vmatprep.subr.mxu0 0.0
    %287 = vmatpush1.msra.mxu0 0.0
    %288 = vmatprep.subr.mxu0 0.0
    %289 = vmatpush1.msra.mxu0 0.0
    %290 = vmatprep.subr.mxu0 0.0
    %291 = vmatpush1.msra.mxu0 0.0
    %292 = vmatprep.subr.mxu0 0.0
    %293 = vmatpush1.msra.mxu0 0.0
    %294 = vmatprep.subr.mxu0 0.0
    %295 = vmatpush1.msra.mxu0 0.0
    %296 = vmatprep.subr.mxu0 0.0
    %297 = vmatpush1.msra.mxu0 0.0
    %298 = vmatprep.subr.mxu0 0.0
    %299 = vmatpush1.msra.mxu0 0.0
    %300 = vmatprep.subr.mxu0 0.0
    %301 = vmatpush1.msra.mxu0 0.0
    %302 = vmatprep.subr.mxu0 0.0
    %303 = vmatpush1.msra.mxu0 0.0
    %304 = vmatprep.subr.mxu0 0.0
    %305 = vmatpush1.msra.mxu0 0.0
    %306 = vmatprep.subr.mxu0 0.0
    %307 = vmatpush1.msra.mxu0 0.0
    %308 = vmatprep.subr.mxu0 0.0
    %309 = vmatpush1.msra.mxu0 0.0
    %310 = vmatprep.subr.mxu0 0.0
    %311 = vmatpush1.msra.mxu0 0.0
    %312 = vmatprep.mubr.f32.mxu0 0.0
    %313 = vmatmul.mubr.f32.gmra.mrb[0].mxu0 %v104
    %v314 = vpop.f32.mrb[0].mxu0
    %v315 = vadd.f32 %v241, %v314
    %v316 = vpop.f32.mrb[0].mxu0
    %v317 = vadd.f32 %v245, %v316
    %318 = vmatprep.mubr.f32.mxu0 0.0
    %319 = vmatmul.mubr.f32.gmra.mrb[0].mxu0 %v105
    %v320 = vpop.f32.mrb[0].mxu0
    %v321 = vadd.f32 %v241, %v320
    %v322 = vpop.f32.mrb[0].mxu0
    %v323 = vadd.f32 %v245, %v322
    %324 = vdwg.mxu0
    %325 = vmatprep.subr.mxu0 0.0
    %326 = vmatpush1.xpose.msra.mxu0 %v315
    %327 = vmatprep.subr.mxu0 0.0
    %328 = vmatpush1.xpose.msra.mxu0 0.0
    %329 = vmatprep.subr.mxu0 0.0
    %330 = vmatpush1.xpose.msra.mxu0 0.0
    %331 = vmatprep.subr.mxu0 0.0
    %332 = vmatpush1.xpose.msra.mxu0 0.0
    %333 = vmatprep.subr.mxu0 0.0
    %334 = vmatpush1.xpose.msra.mxu0 0.0
    %335 = vmatprep.subr.mxu0 0.0
    %336 = vmatpush1.xpose.msra.mxu0 0.0
    %337 = vmatprep.subr.mxu0 0.0
    %338 = vmatpush1.xpose.msra.mxu0 0.0
    %339 = vmatprep.subr.mxu0 0.0
    %340 = vmatpush1.xpose.msra.mxu0 0.0
    %341 = vmatprep.subr.mxu0 0.0
    %342 = vmatpush1.xpose.msra.mxu0 0.0
    %343 = vmatprep.subr.mxu0 0.0
    %344 = vmatpush1.xpose.msra.mxu0 0.0
    %345 = vmatprep.subr.mxu0 0.0
    %346 = vmatpush1.xpose.msra.mxu0 0.0
    %347 = vmatprep.subr.mxu0 0.0
    %348 = vmatpush1.xpose.msra.mxu0 0.0
    %349 = vmatprep.subr.mxu0 0.0
    %350 = vmatpush1.xpose.msra.mxu0 0.0
    %351 = vmatprep.subr.mxu0 0.0
    %352 = vmatpush1.xpose.msra.mxu0 0.0
    %353 = vmatprep.subr.mxu0 0.0
    %354 = vmatpush1.xpose.msra.mxu0 0.0
    %355 = vmatprep.subr.mxu0 0.0
    %356 = vmatpush1.xpose.msra.mxu0 0.0
    %357 = vmatprep.subr.mxu0 0.0
    %358 = vmatpush1.xpose.msra.mxu0 0.0
    %359 = vmatprep.subr.mxu0 0.0
    %360 = vmatpush1.xpose.msra.mxu0 0.0
    %361 = vmatprep.subr.mxu0 0.0
    %362 = vmatpush1.xpose.msra.mxu0 0.0
    %363 = vmatprep.subr.mxu0 0.0
    %364 = vmatpush1.xpose.msra.mxu0 0.0
    %365 = vmatprep.subr.mxu0 0.0
    %366 = vmatpush1.xpose.msra.mxu0 0.0
    %367 = vmatprep.subr.mxu0 0.0
    %368 = vmatpush1.xpose.msra.mxu0 0.0
    %369 = vmatprep.subr.mxu0 0.0
    %370 = vmatpush1.xpose.msra.mxu0 0.0
    %371 = vmatprep.subr.mxu0 0.0
    %372 = vmatpush1.xpose.msra.mxu0 0.0
    %373 = vmatprep.subr.mxu0 0.0
    %374 = vmatpush1.xpose.msra.mxu0 0.0
    %375 = vmatprep.subr.mxu0 0.0
    %376 = vmatpush1.xpose.msra.mxu0 0.0
    %377 = vmatprep.subr.mxu0 0.0
    %378 = vmatpush1.xpose.msra.mxu0 0.0
    %379 = vmatprep.subr.mxu0 0.0
    %380 = vmatpush1.xpose.msra.mxu0 0.0
    %381 = vmatprep.subr.mxu0 0.0
    %382 = vmatpush1.xpose.msra.mxu0 0.0
    %383 = vmatprep.subr.mxu0 0.0
    %384 = vmatpush1.xpose.msra.mxu0 0.0
    %385 = vmatprep.subr.mxu0 0.0
    %386 = vmatpush1.xpose.msra.mxu0 0.0
    %387 = vmatprep.subr.mxu0 0.0
    %388 = vmatpush1.xpose.msra.mxu0 0.0
    %389 = vmatprep.mubr.f32.mxu0 0.0
    %390 = vmatmul.mubr.f32.gmra.mrb[0].mxu0 %v196
    %v391 = vpop.f32.mrb[0].mxu0
    %v392 = vadd.f32 0.0, %v391
    %v393 = vpop.f32.mrb[0].mxu0
    %394 = vdwg.mxu0
    %395 = vmatprep.subr.mxu0 0.0
    %396 = vmatpush1.xpose.msra.mxu0 %v321
    %397 = vmatprep.subr.mxu0 0.0
    %398 = vmatpush1.xpose.msra.mxu0 0.0
    %399 = vmatprep.subr.mxu0 0.0
    %400 = vmatpush1.xpose.msra.mxu0 0.0
    %401 = vmatprep.subr.mxu0 0.0
    %402 = vmatpush1.xpose.msra.mxu0 0.0
    %403 = vmatprep.subr.mxu0 0.0
    %404 = vmatpush1.xpose.msra.mxu0 0.0
    %405 = vmatprep.subr.mxu0 0.0
    %406 = vmatpush1.xpose.msra.mxu0 0.0
    %407 = vmatprep.subr.mxu0 0.0
    %408 = vmatpush1.xpose.msra.mxu0 0.0
    %409 = vmatprep.subr.mxu0 0.0
    %410 = vmatpush1.xpose.msra.mxu0 0.0
    %411 = vmatprep.subr.mxu0 0.0
    %412 = vmatpush1.xpose.msra.mxu0 0.0
    %413 = vmatprep.subr.mxu0 0.0
    %414 = vmatpush1.xpose.msra.mxu0 0.0
    %415 = vmatprep.subr.mxu0 0.0
    %416 = vmatpush1.xpose.msra.mxu0 0.0
    %417 = vmatprep.subr.mxu0 0.0
    %418 = vmatpush1.xpose.msra.mxu0 0.0
    %419 = vmatprep.subr.mxu0 0.0
    %420 = vmatpush1.xpose.msra.mxu0 0.0
    %421 = vmatprep.subr.mxu0 0.0
    %422 = vmatpush1.xpose.msra.mxu0 0.0
    %423 = vmatprep.subr.mxu0 0.0
    %424 = vmatpush1.xpose.msra.mxu0 0.0
    %425 = vmatprep.subr.mxu0 0.0
    %426 = vmatpush1.xpose.msra.mxu0 0.0
    %427 = vmatprep.subr.mxu0 0.0
    %428 = vmatpush1.xpose.msra.mxu0 0.0
    %429 = vmatprep.subr.mxu0 0.0
    %430 = vmatpush1.xpose.msra.mxu0 0.0
    %431 = vmatprep.subr.mxu0 0.0
    %432 = vmatpush1.xpose.msra.mxu0 0.0
    %433 = vmatprep.subr.mxu0 0.0
    %434 = vmatpush1.xpose.msra.mxu0 0.0
    %435 = vmatprep.subr.mxu0 0.0
    %436 = vmatpush1.xpose.msra.mxu0 0.0
    %437 = vmatprep.subr.mxu0 0.0
    %438 = vmatpush1.xpose.msra.mxu0 0.0
    %439 = vmatprep.subr.mxu0 0.0
    %440 = vmatpush1.xpose.msra.mxu0 0.0
    %441 = vmatprep.subr.mxu0 0.0
    %442 = vmatpush1.xpose.msra.mxu0 0.0
    %443 = vmatprep.subr.mxu0 0.0
    %444 = vmatpush1.xpose.msra.mxu0 0.0
    %445 = vmatprep.subr.mxu0 0.0
    %446 = vmatpush1.xpose.msra.mxu0 0.0
    %447 = vmatprep.subr.mxu0 0.0
    %448 = vmatpush1.xpose.msra.mxu0 0.0
    %449 = vmatprep.subr.mxu0 0.0
    %450 = vmatpush1.xpose.msra.mxu0 0.0
    %451 = vmatprep.subr.mxu0 0.0
    %452 = vmatpush1.xpose.msra.mxu0 0.0
    %453 = vmatprep.subr.mxu0 0.0
    %454 = vmatpush1.xpose.msra.mxu0 0.0
    %455 = vmatprep.subr.mxu0 0.0
    %456 = vmatpush1.xpose.msra.mxu0 0.0
    %457 = vmatprep.subr.mxu0 0.0
    %458 = vmatpush1.xpose.msra.mxu0 0.0
    %459 = vmatprep.mubr.f32.mxu0 0.0
    %460 = vmatmul.mubr.f32.gmra.mrb[0].mxu0 %v201
    %v461 = vpop.f32.mrb[0].mxu0
    %v462 = vadd.f32 0.0, %v461
    %v463 = vpop.f32.mrb[0].mxu0
    %464 = vdwg.mxu0
    %vm465 = vcmask 64512
    %v466 = vsel %vm465, %v392, -inf
    %467 = vmax.xlane.f32.xlu0 %v466
    %v468 = vpop.xlane.xlu0 %467
    %v469 = vsel %vm465, %v462, -inf
    %470 = vmax.xlane.f32.xlu0 %v469
    %v471 = vpop.xlane.xlu0 %470
    %v472 = vsub.f32 %v392, %v468
    %v473 = vsub.f32 %v462, %v471
    %v474 = vmul.f32 %v472, 1.442695
    %v475 = vpow.pop %v474
    %v476 = vmul.f32 %v473, 1.442695
    %v477 = vpow.pop %v476
    %v478 = vsel %vm465, %v475, 0.0
    %479 = vadd.xlane.f32.xlu0 %v478
    %v480 = vpop.xlane.xlu0 %479
    %v481 = vsel %vm465, %v477, 0.0
    %482 = vadd.xlane.f32.xlu0 %v481
    %v483 = vpop.xlane.xlu0 %482
    %v484 = vrcp.pop %v480
    %v485 = vrcp.pop %v483
    %v486 = vmul.f32 %v480, %v484
    %v487 = vmul.f32 %v483, %v485
    %v488 = vsub.f32 2.0, %v486
    %v489 = vsub.f32 2.0, %v487
    %v490 = vmul.f32 %v484, %v488
    %v491 = vmul.f32 %v485, %v489
    %v493 = vsel %vm465, %v475, 0
    %495 = vmatprep.subr.mxu0 0.0
    %496 = vmatpush1.msra.mxu0 %v317
    %497 = vmatprep.subr.mxu0 0.0
    %498 = vmatpush1.msra.mxu0 0.0
    %499 = vmatprep.subr.mxu0 0.0
    %500 = vmatpush1.msra.mxu0 0.0
    %501 = vmatprep.subr.mxu0 0.0
    %502 = vmatpush1.msra.mxu0 0.0
    %503 = vmatprep.subr.mxu0 0.0
    %504 = vmatpush1.msra.mxu0 0.0
    %505 = vmatprep.subr.mxu0 0.0
    %506 = vmatpush1.msra.mxu0 0.0
    %507 = vmatprep.subr.mxu0 0.0
    %508 = vmatpush1.msra.mxu0 0.0
    %509 = vmatprep.subr.mxu0 0.0
    %510 = vmatpush1.msra.mxu0 0.0
    %511 = vmatprep.subr.mxu0 0.0
    %512 = vmatpush1.msra.mxu0 0.0
    %513 = vmatprep.subr.mxu0 0.0
    %514 = vmatpush1.msra.mxu0 0.0
    %515 = vmatprep.subr.mxu0 0.0
    %516 = vmatpush1.msra.mxu0 0.0
    %517 = vmatprep.subr.mxu0 0.0
    %518 = vmatpush1.msra.mxu0 0.0
    %519 = vmatprep.subr.mxu0 0.0
    %520 = vmatpush1.msra.mxu0 0.0
    %521 = vmatprep.subr.mxu0 0.0
    %522 = vmatpush1.msra.mxu0 0.0
    %523 = vmatprep.subr.mxu0 0.0
    %524 = vmatpush1.msra.mxu0 0.0
    %525 = vmatprep.subr.mxu0 0.0
    %526 = vmatpush1.msra.mxu0 0.0
    %527 = vmatprep.subr.mxu0 0.0
    %528 = vmatpush1.msra.mxu0 0.0
    %529 = vmatprep.subr.mxu0 0.0
    %530 = vmatpush1.msra.mxu0 0.0
    %531 = vmatprep.subr.mxu0 0.0
    %532 = vmatpush1.msra.mxu0 0.0
    %533 = vmatprep.subr.mxu0 0.0
    %534 = vmatpush1.msra.mxu0 0.0
    %535 = vmatprep.subr.mxu0 0.0
    %536 = vmatpush1.msra.mxu0 0.0
    %537 = vmatprep.subr.mxu0 0.0
    %538 = vmatpush1.msra.mxu0 0.0
    %539 = vmatprep.subr.mxu0 0.0
    %540 = vmatpush1.msra.mxu0 0.0
    %541 = vmatprep.subr.mxu0 0.0
    %542 = vmatpush1.msra.mxu0 0.0
    %543 = vmatprep.subr.mxu0 0.0
    %544 = vmatpush1.msra.mxu0 0.0
    %545 = vmatprep.subr.mxu0 0.0
    %546 = vmatpush1.msra.mxu0 0.0
    %547 = vmatprep.subr.mxu0 0.0
    %548 = vmatpush1.msra.mxu0 0.0
    %549 = vmatprep.subr.mxu0 0.0
    %550 = vmatpush1.msra.mxu0 0.0
    %551 = vmatprep.subr.mxu0 0.0
    %552 = vmatpush1.msra.mxu0 0.0
    %553 = vmatprep.subr.mxu0 0.0
    %554 = vmatpush1.msra.mxu0 0.0
    %555 = vmatprep.subr.mxu0 0.0
    %556 = vmatpush1.msra.mxu0 0.0
    %557 = vmatprep.subr.mxu0 0.0
    %558 = vmatpush1.msra.mxu0 0.0
    %559 = vmatprep.mubr.f32.mxu0 0.0
    %560 = vmatmul.mubr.f32.gmra.mrb[0].mxu0 %v493
    %v561 = vpop.f32.mrb[0].mxu0
    %v562 = vadd.f32 0.0, %v561
    %v563 = vpop.f32.mrb[0].mxu0
    %564 = vdwg.mxu0
    %v566 = vsel %vm465, %v477, 0
    %568 = vmatprep.subr.mxu0 0.0
    %569 = vmatpush1.msra.mxu0 %v323
    %570 = vmatprep.subr.mxu0 0.0
    %571 = vmatpush1.msra.mxu0 0.0
    %572 = vmatprep.subr.mxu0 0.0
    %573 = vmatpush1.msra.mxu0 0.0
    %574 = vmatprep.subr.mxu0 0.0
    %575 = vmatpush1.msra.mxu0 0.0
    %576 = vmatprep.subr.mxu0 0.0
    %577 = vmatpush1.msra.mxu0 0.0
    %578 = vmatprep.subr.mxu0 0.0
    %579 = vmatpush1.msra.mxu0 0.0
    %580 = vmatprep.subr.mxu0 0.0
    %581 = vmatpush1.msra.mxu0 0.0
    %582 = vmatprep.subr.mxu0 0.0
    %583 = vmatpush1.msra.mxu0 0.0
    %584 = vmatprep.subr.mxu0 0.0
    %585 = vmatpush1.msra.mxu0 0.0
    %586 = vmatprep.subr.mxu0 0.0
    %587 = vmatpush1.msra.mxu0 0.0
    %588 = vmatprep.subr.mxu0 0.0
    %589 = vmatpush1.msra.mxu0 0.0
    %590 = vmatprep.subr.mxu0 0.0
    %591 = vmatpush1.msra.mxu0 0.0
    %592 = vmatprep.subr.mxu0 0.0
    %593 = vmatpush1.msra.mxu0 0.0
    %594 = vmatprep.subr.mxu0 0.0
    %595 = vmatpush1.msra.mxu0 0.0
    %596 = vmatprep.subr.mxu0 0.0
    %597 = vmatpush1.msra.mxu0 0.0
    %598 = vmatprep.subr.mxu0 0.0
    %599 = vmatpush1.msra.mxu0 0.0
    %600 = vmatprep.subr.mxu0 0.0
    %601 = vmatpush1.msra.mxu0 0.0
    %602 = vmatprep.subr.mxu0 0.0
    %603 = vmatpush1.msra.mxu0 0.0
    %604 = vmatprep.subr.mxu0 0.0
    %605 = vmatpush1.msra.mxu0 0.0
    %606 = vmatprep.subr.mxu0 0.0
    %607 = vmatpush1.msra.mxu0 0.0
    %608 = vmatprep.subr.mxu0 0.0
    %609 = vmatpush1.msra.mxu0 0.0
    %610 = vmatprep.subr.mxu0 0.0
    %611 = vmatpush1.msra.mxu0 0.0
    %612 = vmatprep.subr.mxu0 0.0
    %613 = vmatpush1.msra.mxu0 0.0
    %614 = vmatprep.subr.mxu0 0.0
    %615 = vmatpush1.msra.mxu0 0.0
    %616 = vmatprep.subr.mxu0 0.0
    %617 = vmatpush1.msra.mxu0 0.0
    %618 = vmatprep.subr.mxu0 0.0
    %619 = vmatpush1.msra.mxu0 0.0
    %620 = vmatprep.subr.mxu0 0.0
    %621 = vmatpush1.msra.mxu0 0.0
    %622 = vmatprep.subr.mxu0 0.0
    %623 = vmatpush1.msra.mxu0 0.0
    %624 = vmatprep.subr.mxu0 0.0
    %625 = vmatpush1.msra.mxu0 0.0
    %626 = vmatprep.subr.mxu0 0.0
    %627 = vmatpush1.msra.mxu0 0.0
    %628 = vmatprep.subr.mxu0 0.0
    %629 = vmatpush1.msra.mxu0 0.0
    %630 = vmatprep.subr.mxu0 0.0
    %631 = vmatpush1.msra.mxu0 0.0
    %632 = vmatprep.mubr.f32.mxu0 0.0
    %633 = vmatmul.mubr.f32.gmra.mrb[0].mxu0 %v566
    %v634 = vpop.f32.mrb[0].mxu0
    %v635 = vadd.f32 0.0, %v634
    %v636 = vpop.f32.mrb[0].mxu0
    %637 = vdwg.mxu0
    %v638 = vmul.f32 %v562, %v490
    %v639 = vmul.f32 %v635, %v491
    %v640 = vadd.f32 %v102, %v638
    %v641 = vadd.f32 %v103, %v639
    %642 = vst [vmem:[#allocation13] sm:$0xff] %v640
    %643 = vst [vmem:[#allocation13 + $0x8] sm:$0xff] %v641
    // Predicated region
    $region50: #{tpu_custom_call.1} parent=1 // pred_check
      _
    $region51: #{tpu_custom_call.1} parent=1 // pred_check_branch
      %645 = sbr.rel (0) target = $region53
    $region52: #{tpu_custom_call.1} parent=1 // pred_region
      %s647 = ssub.s32 256, 256
      %648 = vsyncadd [#allocation4], %s647
      %s649 = sshll.u32 [#allocation13], 4
      %s650 = int_to_ptr.vmem [resolvable:$true] %s649
      %655 = dma.vmem_to_hbm [thread:$0]  %s650, 256, %s6, [#allocation4], 128, 128, 8
    $region53: #{tpu_custom_call.1} parent=1 // pred_fallthru
      _
    // Predicated region
    $region54: #{tpu_custom_call.1} parent=1 // pred_check
      _
    $region55: #{tpu_custom_call.1} parent=1 // pred_check_branch
      %657 = sbr.rel (0) target = $region57
    $region56: #{tpu_custom_call.1} parent=1 // pred_region
      %658 = dma.done [#allocation4], 256
    $region57: #{tpu_custom_call.1} parent=1 // pred_fallthru
      _
    %659 = vsyncpa [#allocation3], 1
    %660 = vsyncpa [#allocation6], 1
    %661 = vsyncpa [#allocation9], 1
    %662 = vsyncpa [#allocation12], 1
    %663 = vsyncpa [#allocation4], 1

</llo_original>
